<compile_context>
chip_gen: v5e
topology: v5e:2x2
jax: 0.10.0
libtpu: 0.0.40
codegen_flags: <defaults>
</compile_context>

<pallas_src>
import functools

import jax
import jax.numpy as jnp
from jax import lax
from jax.experimental import pallas as pl
from jax.experimental.pallas import tpu as pltpu


# ----------------------------------------------------------------------------
# Fused kernel: implicit im2col (in VMEM) -> one MXU dot (f32 acc, channel-
# major) -> batch stats -> BN affine + ReLU -> NCHW-ordered store.
# ----------------------------------------------------------------------------
def _fused_conv_bn_relu_kernel(x_ref, w_ref, g_ref, b_ref, o_ref, *,
                               k, h, w, n, cout, eps):
    hw = h * w
    m = n * hw
    cin = x_ref.shape[-1]

    # ---- implicit im2col: k*k shifted slices packed onto lanes (VMEM only) --
    x = x_ref[...]                                        # (N, Hp, Wp, Cin) bf16
    taps = []
    for dy in range(k):
        for dx in range(k):
            taps.append(x[:, dy:dy + h, dx:dx + w, :].reshape(m, cin))
    patches = jnp.concatenate(taps, axis=1)               # (N*H*W, k*k*Cin) bf16

    # ---- one fat dot, channel-major result, f32 accumulation ----------------
    # (Cout, k*k*Cin) . (N*H*W, k*k*Cin)^T -> (Cout, N*H*W): no acc transpose.
    acc = lax.dot_general(
        w_ref[...], patches,
        dimension_numbers=(((1,), (1,)), ((), ())),
        preferred_element_type=jnp.float32)                # (Cout, N*H*W) f32

    # ---- training-mode BN statistics (biased variance), two-pass in f32 -----
    inv_m = 1.0 / m
    mean = jnp.sum(acc, axis=1, keepdims=True) * inv_m     # (Cout, 1)
    centered = acc - mean
    var = jnp.sum(centered * centered, axis=1, keepdims=True) * inv_m
    inv_std = lax.rsqrt(var + eps)

    # ---- fused BN affine + ReLU ---------------------------------------------
    scale = g_ref[...] * inv_std                           # (Cout, 1)
    shift = b_ref[...] - mean * scale
    y = jnp.maximum(acc * scale + shift, 0.0)              # (Cout, N*H*W)

    # Per-image channel-major store: static lane slices at multiples of H*W.
    for i in range(n):
        o_ref[i] = y[:, i * hw:(i + 1) * hw]


@functools.partial(jax.jit, static_argnames=("kernel_size", "eps"))
def conv_bn_relu_forward(x_nchw, conv_w, conv_b, bn_gamma, bn_beta, *,
                         kernel_size, eps=1e-5):
    n, cin, h, w = x_nchw.shape
    cout = conv_w.shape[0]
    k = kernel_size
    assert k % 2 == 1, "odd kernel_size expected (PyTorch padding=k//2)"
    pad = k // 2
    hp, wp = h + 2 * pad, w + 2 * pad
    hw = h * w

    # conv_b is intentionally unused: BatchNorm (training mode) subtracts the
    # per-channel batch mean, so a constant per-channel conv bias cancels
    # exactly in the forward output.
    del conv_b

    # ---- tiny glue: bf16 cast FIRST, then NHWC transpose + spatial pad ------
    # TODO(synk): for large Cin/H/W, present the input channel-packed (or DMA
    # the unpadded image into a zero-initialized VMEM scratch) to avoid the
    # lane-sparse Cin-last block; at this size the whole input is ~5 KB.
    x_pad = jnp.pad(
        jnp.transpose(x_nchw.astype(jnp.bfloat16), (0, 2, 3, 1)),
        ((0, 0), (pad, pad), (pad, pad), (0, 0)))          # (N, Hp, Wp, Cin)

    # Weights -> (Cout, k*k*Cin), tap-major/channel-minor to match the im2col
    # column order (dy, dx, ci).
    w2 = jnp.transpose(conv_w, (0, 2, 3, 1)).reshape(cout, k * k * cin)
    w2 = w2.astype(jnp.bfloat16)

    g_col = bn_gamma.astype(jnp.float32).reshape(cout, 1)
    b_col = bn_beta.astype(jnp.float32).reshape(cout, 1)

    kern = functools.partial(_fused_conv_bn_relu_kernel,
                             k=k, h=h, w=w, n=n, cout=cout, eps=eps)

    # Whole problem in one grid step: working set (<1 MiB) fits VMEM with huge
    # margin on v5e/v6e/v7x, and a single launch dominates at this size.
    out_flat = pl.pallas_call(
        kern,
        out_shape=jax.ShapeDtypeStruct((n, cout, hw), jnp.float32),
        grid=(1,),
        in_specs=[
            pl.BlockSpec((n, hp, wp, cin), lambda i: (0, 0, 0, 0)),
            pl.BlockSpec((cout, k * k * cin), lambda i: (0, 0)),
            pl.BlockSpec((cout, 1), lambda i: (0, 0)),
            pl.BlockSpec((cout, 1), lambda i: (0, 0)),
        ],
        out_specs=pl.BlockSpec((n, cout, hw), lambda i: (0, 0, 0)),
        compiler_params=pltpu.CompilerParams(
            dimension_semantics=("arbitrary",)),
    )(x_pad, w2, g_col, b_col)

    # Channel-major kernel output -> final NCHW result is a free reshape.
    return out_flat.reshape(n, cout, h, w)


def _reference(x_nchw, conv_w, conv_b, bn_gamma, bn_beta, k, eps=1e-5):
    """Pure-JAX reference mirroring the kernel's bf16 operand quantization."""
    xb = x_nchw.astype(jnp.bfloat16).astype(jnp.float32)
    wb = conv_w.astype(jnp.bfloat16).astype(jnp.float32)
    pad = k // 2
    y = lax.conv_general_dilated(
        xb, wb, window_strides=(1, 1), padding=[(pad, pad), (pad, pad)],
        dimension_numbers=("NCHW", "OIHW", "NCHW"))
    y = y + conv_b[None, :, None, None]
    mean = jnp.mean(y, axis=(0, 2, 3), keepdims=True)
    var = jnp.mean((y - mean) ** 2, axis=(0, 2, 3), keepdims=True)
    y = (y - mean) * lax.rsqrt(var + eps)
    y = y * bn_gamma[None, :, None, None] + bn_beta[None, :, None, None]
    return jnp.maximum(y, 0.0)


if __name__ == "__main__":
    # Small, PyTorch-consistent shapes: batch=2, in_channels=4, out_channels=8,
    # spatial 16x16, kernel_size=3 (padding=1 -> same spatial size).
    N, CIN, COUT, H, W, K = 2, 4, 8, 16, 16, 3

    key = jax.random.PRNGKey(0)
    k1, k2, k3, k4, k5 = jax.random.split(key, 5)
    x = jax.random.normal(k1, (N, CIN, H, W), dtype=jnp.float32)
    conv_w = jax.random.normal(k2, (COUT, CIN, K, K), dtype=jnp.float32) * 0.1
    conv_b = jax.random.normal(k3, (COUT,), dtype=jnp.float32) * 0.1
    bn_gamma = 1.0 + 0.1 * jax.random.normal(k4, (COUT,), dtype=jnp.float32)
    bn_beta = 0.1 * jax.random.normal(k5, (COUT,), dtype=jnp.float32)

    out = conv_bn_relu_forward(x, conv_w, conv_b, bn_gamma, bn_beta,
                               kernel_size=K)
    out = jax.block_until_ready(out)

    ref = _reference(x, conv_w, conv_b, bn_gamma, bn_beta, K)
    assert out.shape == (N, COUT, H, W)
    # Tolerance covers the bf16 conv operands (stats and BN are applied in f32).
    assert jnp.allclose(out, ref, atol=2e-2, rtol=2e-2)
    print("KERNEL_OK")
</pallas_src>

<mosaic_0001>
module attributes {stable_mosaic.version = 11 : i64} {
  func.func @_fused_conv_bn_relu_kernel(%arg0: i32, %arg1: memref<2x18x18x4xbf16, #tpu.memory_space<vmem>>, %arg2: memref<8x36xbf16, #tpu.memory_space<vmem>>, %arg3: memref<8x1xf32, #tpu.memory_space<vmem>>, %arg4: memref<8x1xf32, #tpu.memory_space<vmem>>, %arg5: memref<2x8x256xf32, #tpu.memory_space<vmem>>) attributes {dimension_semantics = [#tpu.dimension_semantics<arbitrary>], iteration_bounds = array<i64: 1>, scalar_prefetch = 0 : i64, scratch_operands = 0 : i64, tpu.core_type = #tpu.core_type<tc>, window_params = [{pipeline_mode = #tpu.pipeline_mode<synchronous>, transform_indices = @transform_0, window_bounds = array<i64: 2, 18, 18, 4>}, {pipeline_mode = #tpu.pipeline_mode<synchronous>, transform_indices = @transform_1, window_bounds = array<i64: 8, 36>}, {pipeline_mode = #tpu.pipeline_mode<synchronous>, transform_indices = @transform_2, window_bounds = array<i64: 8, 1>}, {pipeline_mode = #tpu.pipeline_mode<synchronous>, transform_indices = @transform_3, window_bounds = array<i64: 8, 1>}, {pipeline_mode = #tpu.pipeline_mode<synchronous>, transform_indices = @transform_4, window_bounds = array<i64: 2, 8, 256>}]} {
    %c0 = arith.constant 0 : index
    %c0_0 = arith.constant 0 : index
    %c0_1 = arith.constant 0 : index
    %c0_2 = arith.constant 0 : index
    %0 = vector.load %arg1[%c0, %c0_0, %c0_1, %c0_2] : memref<2x18x18x4xbf16, #tpu.memory_space<vmem>>, vector<2x18x18x4xbf16>
    %1 = vector.extract_strided_slice %0 {offsets = [0, 0, 0, 0], sizes = [2, 16, 16, 4], strides = [1, 1, 1, 1]} : vector<2x18x18x4xbf16> to vector<2x16x16x4xbf16>
    %2 = vector.shape_cast %1 : vector<2x16x16x4xbf16> to vector<512x4xbf16>
    %3 = vector.extract_strided_slice %0 {offsets = [0, 0, 1, 0], sizes = [2, 16, 16, 4], strides = [1, 1, 1, 1]} : vector<2x18x18x4xbf16> to vector<2x16x16x4xbf16>
    %4 = vector.shape_cast %3 : vector<2x16x16x4xbf16> to vector<512x4xbf16>
    %5 = vector.extract_strided_slice %0 {offsets = [0, 0, 2, 0], sizes = [2, 16, 16, 4], strides = [1, 1, 1, 1]} : vector<2x18x18x4xbf16> to vector<2x16x16x4xbf16>
    %6 = vector.shape_cast %5 : vector<2x16x16x4xbf16> to vector<512x4xbf16>
    %7 = vector.extract_strided_slice %0 {offsets = [0, 1, 0, 0], sizes = [2, 16, 16, 4], strides = [1, 1, 1, 1]} : vector<2x18x18x4xbf16> to vector<2x16x16x4xbf16>
    %8 = vector.shape_cast %7 : vector<2x16x16x4xbf16> to vector<512x4xbf16>
    %9 = vector.extract_strided_slice %0 {offsets = [0, 1, 1, 0], sizes = [2, 16, 16, 4], strides = [1, 1, 1, 1]} : vector<2x18x18x4xbf16> to vector<2x16x16x4xbf16>
    %10 = vector.shape_cast %9 : vector<2x16x16x4xbf16> to vector<512x4xbf16>
    %11 = vector.extract_strided_slice %0 {offsets = [0, 1, 2, 0], sizes = [2, 16, 16, 4], strides = [1, 1, 1, 1]} : vector<2x18x18x4xbf16> to vector<2x16x16x4xbf16>
    %12 = vector.shape_cast %11 : vector<2x16x16x4xbf16> to vector<512x4xbf16>
    %13 = vector.extract_strided_slice %0 {offsets = [0, 2, 0, 0], sizes = [2, 16, 16, 4], strides = [1, 1, 1, 1]} : vector<2x18x18x4xbf16> to vector<2x16x16x4xbf16>
    %14 = vector.shape_cast %13 : vector<2x16x16x4xbf16> to vector<512x4xbf16>
    %15 = vector.extract_strided_slice %0 {offsets = [0, 2, 1, 0], sizes = [2, 16, 16, 4], strides = [1, 1, 1, 1]} : vector<2x18x18x4xbf16> to vector<2x16x16x4xbf16>
    %16 = vector.shape_cast %15 : vector<2x16x16x4xbf16> to vector<512x4xbf16>
    %17 = vector.extract_strided_slice %0 {offsets = [0, 2, 2, 0], sizes = [2, 16, 16, 4], strides = [1, 1, 1, 1]} : vector<2x18x18x4xbf16> to vector<2x16x16x4xbf16>
    %18 = vector.shape_cast %17 : vector<2x16x16x4xbf16> to vector<512x4xbf16>
    %19 = tpu.concatenate %2, %4, %6, %8, %10, %12, %14, %16, %18 in 1 : vector<512x4xbf16>, vector<512x4xbf16>, vector<512x4xbf16>, vector<512x4xbf16>, vector<512x4xbf16>, vector<512x4xbf16>, vector<512x4xbf16>, vector<512x4xbf16>, vector<512x4xbf16> -> vector<512x36xbf16>
    %c0_3 = arith.constant 0 : index
    %c0_4 = arith.constant 0 : index
    %20 = vector.load %arg2[%c0_3, %c0_4] : memref<8x36xbf16, #tpu.memory_space<vmem>>, vector<8x36xbf16>
    %cst = arith.constant dense<0.000000e+00> : vector<8x512xf32>
    %21 = tpu.matmul %20, %19, %cst {dimension_numbers = #tpu.dot_dimension_numbers<[1], [1], [0], [0], [0, 0, 1, 0], [], []>} : vector<8x36xbf16>, vector<512x36xbf16>, vector<8x512xf32> -> vector<8x512xf32>
    %cst_5 = arith.constant dense<0.000000e+00> : vector<8xf32>
    %22 = vector.multi_reduction <add>, %21, %cst_5 [1] : vector<8x512xf32> to vector<8xf32>
    %23 = vector.shape_cast %22 : vector<8xf32> to vector<8x1xf32>
    %cst_6 = arith.constant 0.001953125 : f32
    %24 = vector.broadcast %cst_6 : f32 to vector<8x1xf32>
    %25 = arith.mulf %23, %24 : vector<8x1xf32>
    %26 = vector.broadcast %25 : vector<8x1xf32> to vector<8x512xf32>
    %27 = arith.subf %21, %26 : vector<8x512xf32>
    %28 = arith.mulf %27, %27 : vector<8x512xf32>
    %cst_7 = arith.constant dense<0.000000e+00> : vector<8xf32>
    %29 = vector.multi_reduction <add>, %28, %cst_7 [1] : vector<8x512xf32> to vector<8xf32>
    %30 = vector.shape_cast %29 : vector<8xf32> to vector<8x1xf32>
    %cst_8 = arith.constant 0.001953125 : f32
    %31 = vector.broadcast %cst_8 : f32 to vector<8x1xf32>
    %32 = arith.mulf %30, %31 : vector<8x1xf32>
    %cst_9 = arith.constant 9.99999974E-6 : f32
    %33 = vector.broadcast %cst_9 : f32 to vector<8x1xf32>
    %34 = arith.addf %32, %33 : vector<8x1xf32>
    %35 = math.rsqrt %34 : vector<8x1xf32>
    %c0_10 = arith.constant 0 : index
    %c0_11 = arith.constant 0 : index
    %36 = vector.load %arg3[%c0_10, %c0_11] : memref<8x1xf32, #tpu.memory_space<vmem>>, vector<8x1xf32>
    %37 = arith.mulf %36, %35 : vector<8x1xf32>
    %c0_12 = arith.constant 0 : index
    %c0_13 = arith.constant 0 : index
    %38 = vector.load %arg4[%c0_12, %c0_13] : memref<8x1xf32, #tpu.memory_space<vmem>>, vector<8x1xf32>
    %39 = arith.mulf %25, %37 : vector<8x1xf32>
    %40 = arith.subf %38, %39 : vector<8x1xf32>
    %41 = vector.broadcast %37 : vector<8x1xf32> to vector<8x512xf32>
    %42 = arith.mulf %21, %41 : vector<8x512xf32>
    %43 = vector.broadcast %40 : vector<8x1xf32> to vector<8x512xf32>
    %44 = arith.addf %42, %43 : vector<8x512xf32>
    %cst_14 = arith.constant 0.000000e+00 : f32
    %45 = vector.broadcast %cst_14 : f32 to vector<8x512xf32>
    %46 = arith.maximumf %44, %45 : vector<8x512xf32>
    %47 = vector.extract_strided_slice %46 {offsets = [0, 0], sizes = [8, 256], strides = [1, 1]} : vector<8x512xf32> to vector<8x256xf32>
    %c0_15 = arith.constant 0 : index
    %c0_16 = arith.constant 0 : index
    %c0_17 = arith.constant 0 : index
    %48 = vector.load %arg5[%c0_15, %c0_16, %c0_17] : memref<2x8x256xf32, #tpu.memory_space<vmem>>, vector<1x8x256xf32>
    %49 = vector.shape_cast %48 : vector<1x8x256xf32> to vector<8x256xf32>
    %50 = vector.shape_cast %47 : vector<8x256xf32> to vector<1x8x256xf32>
    tpu.vector_store %arg5[%c0_15, %c0_16, %c0_17], %50 {strides = array<i32>} : memref<2x8x256xf32, #tpu.memory_space<vmem>>, vector<1x8x256xf32>,
    %51 = vector.extract_strided_slice %46 {offsets = [0, 256], sizes = [8, 256], strides = [1, 1]} : vector<8x512xf32> to vector<8x256xf32>
    %c1 = arith.constant 1 : index
    %c0_18 = arith.constant 0 : index
    %c0_19 = arith.constant 0 : index
    %52 = vector.load %arg5[%c1, %c0_18, %c0_19] : memref<2x8x256xf32, #tpu.memory_space<vmem>>, vector<1x8x256xf32>
    %53 = vector.shape_cast %52 : vector<1x8x256xf32> to vector<8x256xf32>
    %54 = vector.shape_cast %51 : vector<8x256xf32> to vector<1x8x256xf32>
    tpu.vector_store %arg5[%c1, %c0_18, %c0_19], %54 {strides = array<i32>} : memref<2x8x256xf32, #tpu.memory_space<vmem>>, vector<1x8x256xf32>,
    return
  }
  func.func @transform_0(%arg0: i32) -> (i32, i32, i32, i32) {
    %c0_i32 = arith.constant 0 : i32
    %c0_i32_0 = arith.constant 0 : i32
    %c0_i32_1 = arith.constant 0 : i32
    %c0_i32_2 = arith.constant 0 : i32
    %c0_i32_3 = arith.constant 0 : i32
    return %c0_i32, %c0_i32_0, %c0_i32_1, %c0_i32_2 : i32, i32, i32, i32
  }
  func.func @transform_1(%arg0: i32) -> (i32, i32) {
    %c0_i32 = arith.constant 0 : i32
    %c0_i32_0 = arith.constant 0 : i32
    %c0_i32_1 = arith.constant 0 : i32
    return %c0_i32, %c0_i32_0 : i32, i32
  }
  func.func @transform_2(%arg0: i32) -> (i32, i32) {
    %c0_i32 = arith.constant 0 : i32
    %c0_i32_0 = arith.constant 0 : i32
    %c0_i32_1 = arith.constant 0 : i32
    return %c0_i32, %c0_i32_0 : i32, i32
  }
  func.func @transform_3(%arg0: i32) -> (i32, i32) {
    %c0_i32 = arith.constant 0 : i32
    %c0_i32_0 = arith.constant 0 : i32
    %c0_i32_1 = arith.constant 0 : i32
    return %c0_i32, %c0_i32_0 : i32, i32
  }
  func.func @transform_4(%arg0: i32) -> (i32, i32, i32) {
    %c0_i32 = arith.constant 0 : i32
    %c0_i32_0 = arith.constant 0 : i32
    %c0_i32_1 = arith.constant 0 : i32
    %c0_i32_2 = arith.constant 0 : i32
    return %c0_i32, %c0_i32_0, %c0_i32_1 : i32, i32, i32
  }
}

</mosaic_0001>

<llo_original>
// kernel: conv_bn_relu_forward.1
$region0: #{conv_bn_relu_forward.1}
  #allocation0 [shape = 'u32[]', space=smem, size = 0x4, offset = 0x4, fixed_abs, tag = 'smem constant byte address 0x4 - core index']
  #allocation1 [shape = 'u32[72,128]{1,0:T(1,128)}', space=vmem, size = 0x9000, scoped, tag = 'internal scratch']
  %s0 = inlined_call_operand.vmem [shape: bf16[2,18,18,4], index: 0, kind: input, shape index: {}]
  %s1 = inlined_call_operand.vmem [shape: bf16[8,36], index: 1, kind: input, shape index: {}]
  %s2 = inlined_call_operand.vmem [shape: f32[8,1], index: 2, kind: input, shape index: {}]
  %s3 = inlined_call_operand.vmem [shape: f32[8,1], index: 3, kind: input, shape index: {}]
  %s4 = inlined_call_operand.vmem [shape: f32[2,8,256], index: 4, kind: output, shape index: {}]
  %s5 = sld [smem:[#allocation0]]
  $region26: #{conv_bn_relu_forward.1} parent=0
    _
  %s7 = ssub.s32 1, %s5
  %s8 = scalar_select 0, %s7, %s5
  // Predicated region
  $region2: #{conv_bn_relu_forward.1} parent=0 // pred_check
    _
  $region3: #{conv_bn_relu_forward.1} parent=0 // pred_check_branch
    %10 = sbr.rel (0) target = $region5
  $region4: #{conv_bn_relu_forward.1} parent=0 // pred_region
    _
  $region5: #{conv_bn_relu_forward.1} parent=0 // pred_fallthru
    _
  // Predicated region
  $region6: #{conv_bn_relu_forward.1} parent=0 // pred_check
    _
  $region7: #{conv_bn_relu_forward.1} parent=0 // pred_check_branch
    %12 = sbr.rel (0) target = $region9
  $region8: #{conv_bn_relu_forward.1} parent=0 // pred_region
    _
  $region9: #{conv_bn_relu_forward.1} parent=0 // pred_fallthru
    _
  // Predicated region
  $region10: #{conv_bn_relu_forward.1} parent=0 // pred_check
    _
  $region11: #{conv_bn_relu_forward.1} parent=0 // pred_check_branch
    %14 = sbr.rel (0) target = $region13
  $region12: #{conv_bn_relu_forward.1} parent=0 // pred_region
    _
  $region13: #{conv_bn_relu_forward.1} parent=0 // pred_fallthru
    _
  // Predicated region
  $region14: #{conv_bn_relu_forward.1} parent=0 // pred_check
    _
  $region15: #{conv_bn_relu_forward.1} parent=0 // pred_check_branch
    %16 = sbr.rel (0) target = $region17
  $region16: #{conv_bn_relu_forward.1} parent=0 // pred_region
    _
  $region17: #{conv_bn_relu_forward.1} parent=0 // pred_fallthru
    _
  %v17 = vld [vmem:[%s0] sm:$0xf]
  %v18 = vld [vmem:[%s0 + $0x4] sm:$0xf]
  %v19 = vld [vmem:[%s0 + $0x8] sm:$0x1]
  %v20 = vld [vmem:[%s0 + $0xc] sm:$0xf]
  %v21 = vld [vmem:[%s0 + $0x10] sm:$0xf]
  %v22 = vld [vmem:[%s0 + $0x14] sm:$0x1]
  %v23 = vld [vmem:[%s0 + $0x18] sm:$0xf]
  %v24 = vld [vmem:[%s0 + $0x1c] sm:$0xf]
  %v25 = vld [vmem:[%s0 + $0x20] sm:$0x1]
  %v26 = vld [vmem:[%s0 + $0x24] sm:$0xf]
  %v27 = vld [vmem:[%s0 + $0x28] sm:$0xf]
  %v28 = vld [vmem:[%s0 + $0x2c] sm:$0x1]
  %v29 = vld [vmem:[%s0 + $0x30] sm:$0xf]
  %v30 = vld [vmem:[%s0 + $0x34] sm:$0xf]
  %v31 = vld [vmem:[%s0 + $0x38] sm:$0x1]
  %v32 = vld [vmem:[%s0 + $0x3c] sm:$0xf]
  %v33 = vld [vmem:[%s0 + $0x40] sm:$0xf]
  %v34 = vld [vmem:[%s0 + $0x44] sm:$0x1]
  %v35 = vld [vmem:[%s0 + $0x48] sm:$0xf]
  %v36 = vld [vmem:[%s0 + $0x4c] sm:$0xf]
  %v37 = vld [vmem:[%s0 + $0x50] sm:$0x1]
  %v38 = vld [vmem:[%s0 + $0x54] sm:$0xf]
  %v39 = vld [vmem:[%s0 + $0x58] sm:$0xf]
  %v40 = vld [vmem:[%s0 + $0x5c] sm:$0x1]
  %v41 = vld [vmem:[%s0 + $0x60] sm:$0xf]
  %v42 = vld [vmem:[%s0 + $0x64] sm:$0xf]
  %v43 = vld [vmem:[%s0 + $0x68] sm:$0x1]
  %v44 = vld [vmem:[%s0 + $0x6c] sm:$0xf]
  %v45 = vld [vmem:[%s0 + $0x70] sm:$0xf]
  %v46 = vld [vmem:[%s0 + $0x74] sm:$0x1]
  %v47 = vld [vmem:[%s0 + $0x78] sm:$0xf]
  %v48 = vld [vmem:[%s0 + $0x7c] sm:$0xf]
  %v49 = vld [vmem:[%s0 + $0x80] sm:$0x1]
  %v50 = vld [vmem:[%s0 + $0x84] sm:$0xf]
  %v51 = vld [vmem:[%s0 + $0x88] sm:$0xf]
  %v52 = vld [vmem:[%s0 + $0x8c] sm:$0x1]
  %v53 = vld [vmem:[%s0 + $0x90] sm:$0xf]
  %v54 = vld [vmem:[%s0 + $0x94] sm:$0xf]
  %v55 = vld [vmem:[%s0 + $0x98] sm:$0x1]
  %v56 = vld [vmem:[%s0 + $0x9c] sm:$0xf]
  %v57 = vld [vmem:[%s0 + $0xa0] sm:$0xf]
  %v58 = vld [vmem:[%s0 + $0xa4] sm:$0x1]
  %v59 = vld [vmem:[%s0 + $0xa8] sm:$0xf]
  %v60 = vld [vmem:[%s0 + $0xac] sm:$0xf]
  %v61 = vld [vmem:[%s0 + $0xb0] sm:$0x1]
  %v62 = vld [vmem:[%s0 + $0xb4] sm:$0xf]
  %v63 = vld [vmem:[%s0 + $0xb8] sm:$0xf]
  %v64 = vld [vmem:[%s0 + $0xbc] sm:$0x1]
  %v65 = vld [vmem:[%s0 + $0xc0] sm:$0xf]
  %v66 = vld [vmem:[%s0 + $0xc4] sm:$0xf]
  %v67 = vld [vmem:[%s0 + $0xc8] sm:$0x1]
  %v68 = vld [vmem:[%s0 + $0xcc] sm:$0xf]
  %v69 = vld [vmem:[%s0 + $0xd0] sm:$0xf]
  %v70 = vld [vmem:[%s0 + $0xd4] sm:$0x1]
  %v71 = vld [vmem:[%s0 + $0xd8] sm:$0xf]
  %v72 = vld [vmem:[%s0 + $0xdc] sm:$0xf]
  %v73 = vld [vmem:[%s0 + $0xe0] sm:$0x1]
  %v74 = vld [vmem:[%s0 + $0xe4] sm:$0xf]
  %v75 = vld [vmem:[%s0 + $0xe8] sm:$0xf]
  %v76 = vld [vmem:[%s0 + $0xec] sm:$0x1]
  %v77 = vld [vmem:[%s0 + $0xf0] sm:$0xf]
  %v78 = vld [vmem:[%s0 + $0xf4] sm:$0xf]
  %v79 = vld [vmem:[%s0 + $0xf8] sm:$0x1]
  %v80 = vld [vmem:[%s0 + $0xfc] sm:$0xf]
  %v81 = vld [vmem:[%s0 + $0x100] sm:$0xf]
  %v82 = vld [vmem:[%s0 + $0x104] sm:$0x1]
  %v83 = vld [vmem:[%s0 + $0x108] sm:$0xf]
  %v84 = vld [vmem:[%s0 + $0x10c] sm:$0xf]
  %v85 = vld [vmem:[%s0 + $0x110] sm:$0x1]
  %v86 = vld [vmem:[%s0 + $0x114] sm:$0xf]
  %v87 = vld [vmem:[%s0 + $0x118] sm:$0xf]
  %v88 = vld [vmem:[%s0 + $0x11c] sm:$0x1]
  %v89 = vld [vmem:[%s0 + $0x120] sm:$0xf]
  %v90 = vld [vmem:[%s0 + $0x124] sm:$0xf]
  %v91 = vld [vmem:[%s0 + $0x128] sm:$0x1]
  %v92 = vld [vmem:[%s0 + $0x12c] sm:$0xf]
  %v93 = vld [vmem:[%s0 + $0x130] sm:$0xf]
  %v94 = vld [vmem:[%s0 + $0x134] sm:$0x1]
  %v95 = vld [vmem:[%s0 + $0x138] sm:$0xf]
  %v96 = vld [vmem:[%s0 + $0x13c] sm:$0xf]
  %v97 = vld [vmem:[%s0 + $0x140] sm:$0x1]
  %v98 = vld [vmem:[%s0 + $0x144] sm:$0xf]
  %v99 = vld [vmem:[%s0 + $0x148] sm:$0xf]
  %v100 = vld [vmem:[%s0 + $0x14c] sm:$0x1]
  %v101 = vld [vmem:[%s0 + $0x150] sm:$0xf]
  %v102 = vld [vmem:[%s0 + $0x154] sm:$0xf]
  %v103 = vld [vmem:[%s0 + $0x158] sm:$0x1]
  %v104 = vld [vmem:[%s0 + $0x15c] sm:$0xf]
  %v105 = vld [vmem:[%s0 + $0x160] sm:$0xf]
  %v106 = vld [vmem:[%s0 + $0x164] sm:$0x1]
  %v107 = vld [vmem:[%s0 + $0x168] sm:$0xf]
  %v108 = vld [vmem:[%s0 + $0x16c] sm:$0xf]
  %v109 = vld [vmem:[%s0 + $0x170] sm:$0x1]
  %v110 = vld [vmem:[%s0 + $0x174] sm:$0xf]
  %v111 = vld [vmem:[%s0 + $0x178] sm:$0xf]
  %v112 = vld [vmem:[%s0 + $0x17c] sm:$0x1]
  %v113 = vld [vmem:[%s0 + $0x180] sm:$0xf]
  %v114 = vld [vmem:[%s0 + $0x184] sm:$0xf]
  %v115 = vld [vmem:[%s0 + $0x188] sm:$0x1]
  %v116 = vld [vmem:[%s0 + $0x18c] sm:$0xf]
  %v117 = vld [vmem:[%s0 + $0x190] sm:$0xf]
  %v118 = vld [vmem:[%s0 + $0x194] sm:$0x1]
  %v119 = vld [vmem:[%s0 + $0x198] sm:$0xf]
  %v120 = vld [vmem:[%s0 + $0x19c] sm:$0xf]
  %v121 = vld [vmem:[%s0 + $0x1a0] sm:$0x1]
  %v122 = vld [vmem:[%s0 + $0x1a4] sm:$0xf]
  %v123 = vld [vmem:[%s0 + $0x1a8] sm:$0xf]
  %v124 = vld [vmem:[%s0 + $0x1ac] sm:$0x1]
  %vm125 = vsmask.f32 3328
  %vm126 = vsmask.f32 7440
  %vm127 = vmor %vm125, %vm126
  %v129 = vshrl.u32 %v17, 16
  %v131 = vrot.slane %v129, 4
  %v132 = vshll.u32 %v17, 16
  %v134 = vrot.slane %v132, 5
  %v135 = vor.u32 %v131, %v134
  %v136 = vrot.slane %v135, 4
  %v138 = vshll.u32 %v18, 16
  %v140 = vrot.slane %v138, 5
  %v141 = vsel %vm127, %v136, %v140
  %v142 = vshrl.u32 %v18, 16
  %v144 = vrot.slane %v142, 4
  %v145 = vor.u32 %v144, %v140
  %v146 = vrot.slane %v145, 4
  %v148 = vshll.u32 %v19, 16
  %v150 = vrot.slane %v148, 5
  %v151 = vsel %vm127, %v146, %v150
  %v153 = vshrl.u32 %v20, 16
  %v155 = vrot.slane %v153, 4
  %v156 = vshll.u32 %v20, 16
  %v158 = vrot.slane %v156, 5
  %v159 = vor.u32 %v155, %v158
  %v160 = vrot.slane %v159, 4
  %v162 = vshll.u32 %v21, 16
  %v164 = vrot.slane %v162, 5
  %v165 = vsel %vm127, %v160, %v164
  %v166 = vshrl.u32 %v21, 16
  %v168 = vrot.slane %v166, 4
  %v169 = vor.u32 %v168, %v164
  %v170 = vrot.slane %v169, 4
  %v172 = vshll.u32 %v22, 16
  %v174 = vrot.slane %v172, 5
  %v175 = vsel %vm127, %v170, %v174
  %v177 = vshrl.u32 %v23, 16
  %v179 = vrot.slane %v177, 4
  %v180 = vshll.u32 %v23, 16
  %v182 = vrot.slane %v180, 5
  %v183 = vor.u32 %v179, %v182
  %v184 = vrot.slane %v183, 4
  %v186 = vshll.u32 %v24, 16
  %v188 = vrot.slane %v186, 5
  %v189 = vsel %vm127, %v184, %v188
  %v190 = vshrl.u32 %v24, 16
  %v192 = vrot.slane %v190, 4
  %v193 = vor.u32 %v192, %v188
  %v194 = vrot.slane %v193, 4
  %v196 = vshll.u32 %v25, 16
  %v198 = vrot.slane %v196, 5
  %v199 = vsel %vm127, %v194, %v198
  %v201 = vshrl.u32 %v26, 16
  %v203 = vrot.slane %v201, 4
  %v204 = vshll.u32 %v26, 16
  %v206 = vrot.slane %v204, 5
  %v207 = vor.u32 %v203, %v206
  %v208 = vrot.slane %v207, 4
  %v210 = vshll.u32 %v27, 16
  %v212 = vrot.slane %v210, 5
  %v213 = vsel %vm127, %v208, %v212
  %v214 = vshrl.u32 %v27, 16
  %v216 = vrot.slane %v214, 4
  %v217 = vor.u32 %v216, %v212
  %v218 = vrot.slane %v217, 4
  %v220 = vshll.u32 %v28, 16
  %v222 = vrot.slane %v220, 5
  %v223 = vsel %vm127, %v218, %v222
  %v225 = vshrl.u32 %v29, 16
  %v227 = vrot.slane %v225, 4
  %v228 = vshll.u32 %v29, 16
  %v230 = vrot.slane %v228, 5
  %v231 = vor.u32 %v227, %v230
  %v232 = vrot.slane %v231, 4
  %v234 = vshll.u32 %v30, 16
  %v236 = vrot.slane %v234, 5
  %v237 = vsel %vm127, %v232, %v236
  %v238 = vshrl.u32 %v30, 16
  %v240 = vrot.slane %v238, 4
  %v241 = vor.u32 %v240, %v236
  %v242 = vrot.slane %v241, 4
  %v244 = vshll.u32 %v31, 16
  %v246 = vrot.slane %v244, 5
  %v247 = vsel %vm127, %v242, %v246
  %v249 = vshrl.u32 %v32, 16
  %v251 = vrot.slane %v249, 4
  %v252 = vshll.u32 %v32, 16
  %v254 = vrot.slane %v252, 5
  %v255 = vor.u32 %v251, %v254
  %v256 = vrot.slane %v255, 4
  %v258 = vshll.u32 %v33, 16
  %v260 = vrot.slane %v258, 5
  %v261 = vsel %vm127, %v256, %v260
  %v262 = vshrl.u32 %v33, 16
  %v264 = vrot.slane %v262, 4
  %v265 = vor.u32 %v264, %v260
  %v266 = vrot.slane %v265, 4
  %v268 = vshll.u32 %v34, 16
  %v270 = vrot.slane %v268, 5
  %v271 = vsel %vm127, %v266, %v270
  %v273 = vshrl.u32 %v35, 16
  %v275 = vrot.slane %v273, 4
  %v276 = vshll.u32 %v35, 16
  %v278 = vrot.slane %v276, 5
  %v279 = vor.u32 %v275, %v278
  %v280 = vrot.slane %v279, 4
  %v282 = vshll.u32 %v36, 16
  %v284 = vrot.slane %v282, 5
  %v285 = vsel %vm127, %v280, %v284
  %v286 = vshrl.u32 %v36, 16
  %v288 = vrot.slane %v286, 4
  %v289 = vor.u32 %v288, %v284
  %v290 = vrot.slane %v289, 4
  %v292 = vshll.u32 %v37, 16
  %v294 = vrot.slane %v292, 5
  %v295 = vsel %vm127, %v290, %v294
  %v297 = vshrl.u32 %v38, 16
  %v299 = vrot.slane %v297, 4
  %v300 = vshll.u32 %v38, 16
  %v302 = vrot.slane %v300, 5
  %v303 = vor.u32 %v299, %v302
  %v304 = vrot.slane %v303, 4
  %v306 = vshll.u32 %v39, 16
  %v308 = vrot.slane %v306, 5
  %v309 = vsel %vm127, %v304, %v308
  %v310 = vshrl.u32 %v39, 16
  %v312 = vrot.slane %v310, 4
  %v313 = vor.u32 %v312, %v308
  %v314 = vrot.slane %v313, 4
  %v316 = vshll.u32 %v40, 16
  %v318 = vrot.slane %v316, 5
  %v319 = vsel %vm127, %v314, %v318
  %v321 = vshrl.u32 %v41, 16
  %v323 = vrot.slane %v321, 4
  %v324 = vshll.u32 %v41, 16
  %v326 = vrot.slane %v324, 5
  %v327 = vor.u32 %v323, %v326
  %v328 = vrot.slane %v327, 4
  %v330 = vshll.u32 %v42, 16
  %v332 = vrot.slane %v330, 5
  %v333 = vsel %vm127, %v328, %v332
  %v334 = vshrl.u32 %v42, 16
  %v336 = vrot.slane %v334, 4
  %v337 = vor.u32 %v336, %v332
  %v338 = vrot.slane %v337, 4
  %v340 = vshll.u32 %v43, 16
  %v342 = vrot.slane %v340, 5
  %v343 = vsel %vm127, %v338, %v342
  %v345 = vshrl.u32 %v44, 16
  %v347 = vrot.slane %v345, 4
  %v348 = vshll.u32 %v44, 16
  %v350 = vrot.slane %v348, 5
  %v351 = vor.u32 %v347, %v350
  %v352 = vrot.slane %v351, 4
  %v354 = vshll.u32 %v45, 16
  %v356 = vrot.slane %v354, 5
  %v357 = vsel %vm127, %v352, %v356
  %v358 = vshrl.u32 %v45, 16
  %v360 = vrot.slane %v358, 4
  %v361 = vor.u32 %v360, %v356
  %v362 = vrot.slane %v361, 4
  %v364 = vshll.u32 %v46, 16
  %v366 = vrot.slane %v364, 5
  %v367 = vsel %vm127, %v362, %v366
  %v369 = vshrl.u32 %v47, 16
  %v371 = vrot.slane %v369, 4
  %v372 = vshll.u32 %v47, 16
  %v374 = vrot.slane %v372, 5
  %v375 = vor.u32 %v371, %v374
  %v376 = vrot.slane %v375, 4
  %v378 = vshll.u32 %v48, 16
  %v380 = vrot.slane %v378, 5
  %v381 = vsel %vm127, %v376, %v380
  %v382 = vshrl.u32 %v48, 16
  %v384 = vrot.slane %v382, 4
  %v385 = vor.u32 %v384, %v380
  %v386 = vrot.slane %v385, 4
  %v388 = vshll.u32 %v49, 16
  %v390 = vrot.slane %v388, 5
  %v391 = vsel %vm127, %v386, %v390
  %v393 = vshrl.u32 %v50, 16
  %v395 = vrot.slane %v393, 4
  %v396 = vshll.u32 %v50, 16
  %v398 = vrot.slane %v396, 5
  %v399 = vor.u32 %v395, %v398
  %v400 = vrot.slane %v399, 4
  %v402 = vshll.u32 %v51, 16
  %v404 = vrot.slane %v402, 5
  %v405 = vsel %vm127, %v400, %v404
  %v406 = vshrl.u32 %v51, 16
  %v408 = vrot.slane %v406, 4
  %v409 = vor.u32 %v408, %v404
  %v410 = vrot.slane %v409, 4
  %v412 = vshll.u32 %v52, 16
  %v414 = vrot.slane %v412, 5
  %v415 = vsel %vm127, %v410, %v414
  %v417 = vshrl.u32 %v53, 16
  %v419 = vrot.slane %v417, 4
  %v420 = vshll.u32 %v53, 16
  %v422 = vrot.slane %v420, 5
  %v423 = vor.u32 %v419, %v422
  %v424 = vrot.slane %v423, 4
  %v426 = vshll.u32 %v54, 16
  %v428 = vrot.slane %v426, 5
  %v429 = vsel %vm127, %v424, %v428
  %v430 = vshrl.u32 %v54, 16
  %v432 = vrot.slane %v430, 4
  %v433 = vor.u32 %v432, %v428
  %v434 = vrot.slane %v433, 4
  %v436 = vshll.u32 %v55, 16
  %v438 = vrot.slane %v436, 5
  %v439 = vsel %vm127, %v434, %v438
  %v441 = vshrl.u32 %v56, 16
  %v443 = vrot.slane %v441, 4
  %v444 = vshll.u32 %v56, 16
  %v446 = vrot.slane %v444, 5
  %v447 = vor.u32 %v443, %v446
  %v448 = vrot.slane %v447, 4
  %v450 = vshll.u32 %v57, 16
  %v452 = vrot.slane %v450, 5
  %v453 = vsel %vm127, %v448, %v452
  %v454 = vshrl.u32 %v57, 16
  %v456 = vrot.slane %v454, 4
  %v457 = vor.u32 %v456, %v452
  %v458 = vrot.slane %v457, 4
  %v460 = vshll.u32 %v58, 16
  %v462 = vrot.slane %v460, 5
  %v463 = vsel %vm127, %v458, %v462
  %v465 = vshrl.u32 %v59, 16
  %v467 = vrot.slane %v465, 4
  %v468 = vshll.u32 %v59, 16
  %v470 = vrot.slane %v468, 5
  %v471 = vor.u32 %v467, %v470
  %v472 = vrot.slane %v471, 4
  %v474 = vshll.u32 %v60, 16
  %v476 = vrot.slane %v474, 5
  %v477 = vsel %vm127, %v472, %v476
  %v478 = vshrl.u32 %v60, 16
  %v480 = vrot.slane %v478, 4
  %v481 = vor.u32 %v480, %v476
  %v482 = vrot.slane %v481, 4
  %v484 = vshll.u32 %v61, 16
  %v486 = vrot.slane %v484, 5
  %v487 = vsel %vm127, %v482, %v486
  %v489 = vshrl.u32 %v62, 16
  %v491 = vrot.slane %v489, 4
  %v492 = vshll.u32 %v62, 16
  %v494 = vrot.slane %v492, 5
  %v495 = vor.u32 %v491, %v494
  %v496 = vrot.slane %v495, 4
  %v498 = vshll.u32 %v63, 16
  %v500 = vrot.slane %v498, 5
  %v501 = vsel %vm127, %v496, %v500
  %v502 = vshrl.u32 %v63, 16
  %v504 = vrot.slane %v502, 4
  %v505 = vor.u32 %v504, %v500
  %v506 = vrot.slane %v505, 4
  %v508 = vshll.u32 %v64, 16
  %v510 = vrot.slane %v508, 5
  %v511 = vsel %vm127, %v506, %v510
  %v513 = vshrl.u32 %v71, 16
  %v515 = vrot.slane %v513, 4
  %v516 = vshll.u32 %v71, 16
  %v518 = vrot.slane %v516, 5
  %v519 = vor.u32 %v515, %v518
  %v520 = vrot.slane %v519, 4
  %v522 = vshll.u32 %v72, 16
  %v524 = vrot.slane %v522, 5
  %v525 = vsel %vm127, %v520, %v524
  %v526 = vshrl.u32 %v72, 16
  %v528 = vrot.slane %v526, 4
  %v529 = vor.u32 %v528, %v524
  %v530 = vrot.slane %v529, 4
  %v532 = vshll.u32 %v73, 16
  %v534 = vrot.slane %v532, 5
  %v535 = vsel %vm127, %v530, %v534
  %v537 = vshrl.u32 %v74, 16
  %v539 = vrot.slane %v537, 4
  %v540 = vshll.u32 %v74, 16
  %v542 = vrot.slane %v540, 5
  %v543 = vor.u32 %v539, %v542
  %v544 = vrot.slane %v543, 4
  %v546 = vshll.u32 %v75, 16
  %v548 = vrot.slane %v546, 5
  %v549 = vsel %vm127, %v544, %v548
  %v550 = vshrl.u32 %v75, 16
  %v552 = vrot.slane %v550, 4
  %v553 = vor.u32 %v552, %v548
  %v554 = vrot.slane %v553, 4
  %v556 = vshll.u32 %v76, 16
  %v558 = vrot.slane %v556, 5
  %v559 = vsel %vm127, %v554, %v558
  %v561 = vshrl.u32 %v77, 16
  %v563 = vrot.slane %v561, 4
  %v564 = vshll.u32 %v77, 16
  %v566 = vrot.slane %v564, 5
  %v567 = vor.u32 %v563, %v566
  %v568 = vrot.slane %v567, 4
  %v570 = vshll.u32 %v78, 16
  %v572 = vrot.slane %v570, 5
  %v573 = vsel %vm127, %v568, %v572
  %v574 = vshrl.u32 %v78, 16
  %v576 = vrot.slane %v574, 4
  %v577 = vor.u32 %v576, %v572
  %v578 = vrot.slane %v577, 4
  %v580 = vshll.u32 %v79, 16
  %v582 = vrot.slane %v580, 5
  %v583 = vsel %vm127, %v578, %v582
  %v585 = vshrl.u32 %v80, 16
  %v587 = vrot.slane %v585, 4
  %v588 = vshll.u32 %v80, 16
  %v590 = vrot.slane %v588, 5
  %v591 = vor.u32 %v587, %v590
  %v592 = vrot.slane %v591, 4
  %v594 = vshll.u32 %v81, 16
  %v596 = vrot.slane %v594, 5
  %v597 = vsel %vm127, %v592, %v596
  %v598 = vshrl.u32 %v81, 16
  %v600 = vrot.slane %v598, 4
  %v601 = vor.u32 %v600, %v596
  %v602 = vrot.slane %v601, 4
  %v604 = vshll.u32 %v82, 16
  %v606 = vrot.slane %v604, 5
  %v607 = vsel %vm127, %v602, %v606
  %v609 = vshrl.u32 %v83, 16
  %v611 = vrot.slane %v609, 4
  %v612 = vshll.u32 %v83, 16
  %v614 = vrot.slane %v612, 5
  %v615 = vor.u32 %v611, %v614
  %v616 = vrot.slane %v615, 4
  %v618 = vshll.u32 %v84, 16
  %v620 = vrot.slane %v618, 5
  %v621 = vsel %vm127, %v616, %v620
  %v622 = vshrl.u32 %v84, 16
  %v624 = vrot.slane %v622, 4
  %v625 = vor.u32 %v624, %v620
  %v626 = vrot.slane %v625, 4
  %v628 = vshll.u32 %v85, 16
  %v630 = vrot.slane %v628, 5
  %v631 = vsel %vm127, %v626, %v630
  %v633 = vshrl.u32 %v86, 16
  %v635 = vrot.slane %v633, 4
  %v636 = vshll.u32 %v86, 16
  %v638 = vrot.slane %v636, 5
  %v639 = vor.u32 %v635, %v638
  %v640 = vrot.slane %v639, 4
  %v642 = vshll.u32 %v87, 16
  %v644 = vrot.slane %v642, 5
  %v645 = vsel %vm127, %v640, %v644
  %v646 = vshrl.u32 %v87, 16
  %v648 = vrot.slane %v646, 4
  %v649 = vor.u32 %v648, %v644
  %v650 = vrot.slane %v649, 4
  %v652 = vshll.u32 %v88, 16
  %v654 = vrot.slane %v652, 5
  %v655 = vsel %vm127, %v650, %v654
  %v657 = vshrl.u32 %v89, 16
  %v659 = vrot.slane %v657, 4
  %v660 = vshll.u32 %v89, 16
  %v662 = vrot.slane %v660, 5
  %v663 = vor.u32 %v659, %v662
  %v664 = vrot.slane %v663, 4
  %v666 = vshll.u32 %v90, 16
  %v668 = vrot.slane %v666, 5
  %v669 = vsel %vm127, %v664, %v668
  %v670 = vshrl.u32 %v90, 16
  %v672 = vrot.slane %v670, 4
  %v673 = vor.u32 %v672, %v668
  %v674 = vrot.slane %v673, 4
  %v676 = vshll.u32 %v91, 16
  %v678 = vrot.slane %v676, 5
  %v679 = vsel %vm127, %v674, %v678
  %v681 = vshrl.u32 %v92, 16
  %v683 = vrot.slane %v681, 4
  %v684 = vshll.u32 %v92, 16
  %v686 = vrot.slane %v684, 5
  %v687 = vor.u32 %v683, %v686
  %v688 = vrot.slane %v687, 4
  %v690 = vshll.u32 %v93, 16
  %v692 = vrot.slane %v690, 5
  %v693 = vsel %vm127, %v688, %v692
  %v694 = vshrl.u32 %v93, 16
  %v696 = vrot.slane %v694, 4
  %v697 = vor.u32 %v696, %v692
  %v698 = vrot.slane %v697, 4
  %v700 = vshll.u32 %v94, 16
  %v702 = vrot.slane %v700, 5
  %v703 = vsel %vm127, %v698, %v702
  %v705 = vshrl.u32 %v95, 16
  %v707 = vrot.slane %v705, 4
  %v708 = vshll.u32 %v95, 16
  %v710 = vrot.slane %v708, 5
  %v711 = vor.u32 %v707, %v710
  %v712 = vrot.slane %v711, 4
  %v714 = vshll.u32 %v96, 16
  %v716 = vrot.slane %v714, 5
  %v717 = vsel %vm127, %v712, %v716
  %v718 = vshrl.u32 %v96, 16
  %v720 = vrot.slane %v718, 4
  %v721 = vor.u32 %v720, %v716
  %v722 = vrot.slane %v721, 4
  %v724 = vshll.u32 %v97, 16
  %v726 = vrot.slane %v724, 5
  %v727 = vsel %vm127, %v722, %v726
  %v729 = vshrl.u32 %v98, 16
  %v731 = vrot.slane %v729, 4
  %v732 = vshll.u32 %v98, 16
  %v734 = vrot.slane %v732, 5
  %v735 = vor.u32 %v731, %v734
  %v736 = vrot.slane %v735, 4
  %v738 = vshll.u32 %v99, 16
  %v740 = vrot.slane %v738, 5
  %v741 = vsel %vm127, %v736, %v740
  %v742 = vshrl.u32 %v99, 16
  %v744 = vrot.slane %v742, 4
  %v745 = vor.u32 %v744, %v740
  %v746 = vrot.slane %v745, 4
  %v748 = vshll.u32 %v100, 16
  %v750 = vrot.slane %v748, 5
  %v751 = vsel %vm127, %v746, %v750
  %v753 = vshrl.u32 %v101, 16
  %v755 = vrot.slane %v753, 4
  %v756 = vshll.u32 %v101, 16
  %v758 = vrot.slane %v756, 5
  %v759 = vor.u32 %v755, %v758
  %v760 = vrot.slane %v759, 4
  %v762 = vshll.u32 %v102, 16
  %v764 = vrot.slane %v762, 5
  %v765 = vsel %vm127, %v760, %v764
  %v766 = vshrl.u32 %v102, 16
  %v768 = vrot.slane %v766, 4
  %v769 = vor.u32 %v768, %v764
  %v770 = vrot.slane %v769, 4
  %v772 = vshll.u32 %v103, 16
  %v774 = vrot.slane %v772, 5
  %v775 = vsel %vm127, %v770, %v774
  %v777 = vshrl.u32 %v104, 16
  %v779 = vrot.slane %v777, 4
  %v780 = vshll.u32 %v104, 16
  %v782 = vrot.slane %v780, 5
  %v783 = vor.u32 %v779, %v782
  %v784 = vrot.slane %v783, 4
  %v786 = vshll.u32 %v105, 16
  %v788 = vrot.slane %v786, 5
  %v789 = vsel %vm127, %v784, %v788
  %v790 = vshrl.u32 %v105, 16
  %v792 = vrot.slane %v790, 4
  %v793 = vor.u32 %v792, %v788
  %v794 = vrot.slane %v793, 4
  %v796 = vshll.u32 %v106, 16
  %v798 = vrot.slane %v796, 5
  %v799 = vsel %vm127, %v794, %v798
  %v801 = vshrl.u32 %v107, 16
  %v803 = vrot.slane %v801, 4
  %v804 = vshll.u32 %v107, 16
  %v806 = vrot.slane %v804, 5
  %v807 = vor.u32 %v803, %v806
  %v808 = vrot.slane %v807, 4
  %v810 = vshll.u32 %v108, 16
  %v812 = vrot.slane %v810, 5
  %v813 = vsel %vm127, %v808, %v812
  %v814 = vshrl.u32 %v108, 16
  %v816 = vrot.slane %v814, 4
  %v817 = vor.u32 %v816, %v812
  %v818 = vrot.slane %v817, 4
  %v820 = vshll.u32 %v109, 16
  %v822 = vrot.slane %v820, 5
  %v823 = vsel %vm127, %v818, %v822
  %v825 = vshrl.u32 %v110, 16
  %v827 = vrot.slane %v825, 4
  %v828 = vshll.u32 %v110, 16
  %v830 = vrot.slane %v828, 5
  %v831 = vor.u32 %v827, %v830
  %v832 = vrot.slane %v831, 4
  %v834 = vshll.u32 %v111, 16
  %v836 = vrot.slane %v834, 5
  %v837 = vsel %vm127, %v832, %v836
  %v838 = vshrl.u32 %v111, 16
  %v840 = vrot.slane %v838, 4
  %v841 = vor.u32 %v840, %v836
  %v842 = vrot.slane %v841, 4
  %v844 = vshll.u32 %v112, 16
  %v846 = vrot.slane %v844, 5
  %v847 = vsel %vm127, %v842, %v846
  %v849 = vshrl.u32 %v113, 16
  %v851 = vrot.slane %v849, 4
  %v852 = vshll.u32 %v113, 16
  %v854 = vrot.slane %v852, 5
  %v855 = vor.u32 %v851, %v854
  %v856 = vrot.slane %v855, 4
  %v858 = vshll.u32 %v114, 16
  %v860 = vrot.slane %v858, 5
  %v861 = vsel %vm127, %v856, %v860
  %v862 = vshrl.u32 %v114, 16
  %v864 = vrot.slane %v862, 4
  %v865 = vor.u32 %v864, %v860
  %v866 = vrot.slane %v865, 4
  %v868 = vshll.u32 %v115, 16
  %v870 = vrot.slane %v868, 5
  %v871 = vsel %vm127, %v866, %v870
  %v873 = vshrl.u32 %v116, 16
  %v875 = vrot.slane %v873, 4
  %v876 = vshll.u32 %v116, 16
  %v878 = vrot.slane %v876, 5
  %v879 = vor.u32 %v875, %v878
  %v880 = vrot.slane %v879, 4
  %v882 = vshll.u32 %v117, 16
  %v884 = vrot.slane %v882, 5
  %v885 = vsel %vm127, %v880, %v884
  %v886 = vshrl.u32 %v117, 16
  %v888 = vrot.slane %v886, 4
  %v889 = vor.u32 %v888, %v884
  %v890 = vrot.slane %v889, 4
  %v892 = vshll.u32 %v118, 16
  %v894 = vrot.slane %v892, 5
  %v895 = vsel %vm127, %v890, %v894
  %vm992 = vcmask 1042432
  %vm993 = vcmask 1046532
  %vm994 = vmor %vm992, %vm993
  %v995 = vrot.slane %v17, 5
  %v996 = vrot.slane %v995, 4
  %v997 = vrot.slane %v18, 5
  %v998 = vsel %vm994, %v996, %v997
  %v999 = vrot.slane %v997, 4
  %v1000 = vrot.slane %v19, 5
  %v1001 = vsel %vm994, %v999, %v1000
  %v1002 = vrot.slane %v20, 5
  %v1003 = vrot.slane %v1002, 4
  %v1004 = vrot.slane %v21, 5
  %v1005 = vsel %vm994, %v1003, %v1004
  %v1006 = vrot.slane %v1004, 4
  %v1007 = vrot.slane %v22, 5
  %v1008 = vsel %vm994, %v1006, %v1007
  %v1009 = vrot.slane %v23, 5
  %v1010 = vrot.slane %v1009, 4
  %v1011 = vrot.slane %v24, 5
  %v1012 = vsel %vm994, %v1010, %v1011
  %v1013 = vrot.slane %v1011, 4
  %v1014 = vrot.slane %v25, 5
  %v1015 = vsel %vm994, %v1013, %v1014
  %v1016 = vrot.slane %v26, 5
  %v1017 = vrot.slane %v1016, 4
  %v1018 = vrot.slane %v27, 5
  %v1019 = vsel %vm994, %v1017, %v1018
  %v1020 = vrot.slane %v1018, 4
  %v1021 = vrot.slane %v28, 5
  %v1022 = vsel %vm994, %v1020, %v1021
  %v1023 = vrot.slane %v29, 5
  %v1024 = vrot.slane %v1023, 4
  %v1025 = vrot.slane %v30, 5
  %v1026 = vsel %vm994, %v1024, %v1025
  %v1027 = vrot.slane %v1025, 4
  %v1028 = vrot.slane %v31, 5
  %v1029 = vsel %vm994, %v1027, %v1028
  %v1030 = vrot.slane %v32, 5
  %v1031 = vrot.slane %v1030, 4
  %v1032 = vrot.slane %v33, 5
  %v1033 = vsel %vm994, %v1031, %v1032
  %v1034 = vrot.slane %v1032, 4
  %v1035 = vrot.slane %v34, 5
  %v1036 = vsel %vm994, %v1034, %v1035
  %v1037 = vrot.slane %v35, 5
  %v1038 = vrot.slane %v1037, 4
  %v1039 = vrot.slane %v36, 5
  %v1040 = vsel %vm994, %v1038, %v1039
  %v1041 = vrot.slane %v1039, 4
  %v1042 = vrot.slane %v37, 5
  %v1043 = vsel %vm994, %v1041, %v1042
  %v1044 = vrot.slane %v38, 5
  %v1045 = vrot.slane %v1044, 4
  %v1046 = vrot.slane %v39, 5
  %v1047 = vsel %vm994, %v1045, %v1046
  %v1048 = vrot.slane %v1046, 4
  %v1049 = vrot.slane %v40, 5
  %v1050 = vsel %vm994, %v1048, %v1049
  %v1051 = vrot.slane %v41, 5
  %v1052 = vrot.slane %v1051, 4
  %v1053 = vrot.slane %v42, 5
  %v1054 = vsel %vm994, %v1052, %v1053
  %v1055 = vrot.slane %v1053, 4
  %v1056 = vrot.slane %v43, 5
  %v1057 = vsel %vm994, %v1055, %v1056
  %v1058 = vrot.slane %v44, 5
  %v1059 = vrot.slane %v1058, 4
  %v1060 = vrot.slane %v45, 5
  %v1061 = vsel %vm994, %v1059, %v1060
  %v1062 = vrot.slane %v1060, 4
  %v1063 = vrot.slane %v46, 5
  %v1064 = vsel %vm994, %v1062, %v1063
  %v1065 = vrot.slane %v47, 5
  %v1066 = vrot.slane %v1065, 4
  %v1067 = vrot.slane %v48, 5
  %v1068 = vsel %vm994, %v1066, %v1067
  %v1069 = vrot.slane %v1067, 4
  %v1070 = vrot.slane %v49, 5
  %v1071 = vsel %vm994, %v1069, %v1070
  %v1072 = vrot.slane %v50, 5
  %v1073 = vrot.slane %v1072, 4
  %v1074 = vrot.slane %v51, 5
  %v1075 = vsel %vm994, %v1073, %v1074
  %v1076 = vrot.slane %v1074, 4
  %v1077 = vrot.slane %v52, 5
  %v1078 = vsel %vm994, %v1076, %v1077
  %v1079 = vrot.slane %v53, 5
  %v1080 = vrot.slane %v1079, 4
  %v1081 = vrot.slane %v54, 5
  %v1082 = vsel %vm994, %v1080, %v1081
  %v1083 = vrot.slane %v1081, 4
  %v1084 = vrot.slane %v55, 5
  %v1085 = vsel %vm994, %v1083, %v1084
  %v1086 = vrot.slane %v56, 5
  %v1087 = vrot.slane %v1086, 4
  %v1088 = vrot.slane %v57, 5
  %v1089 = vsel %vm994, %v1087, %v1088
  %v1090 = vrot.slane %v1088, 4
  %v1091 = vrot.slane %v58, 5
  %v1092 = vsel %vm994, %v1090, %v1091
  %v1093 = vrot.slane %v59, 5
  %v1094 = vrot.slane %v1093, 4
  %v1095 = vrot.slane %v60, 5
  %v1096 = vsel %vm994, %v1094, %v1095
  %v1097 = vrot.slane %v1095, 4
  %v1098 = vrot.slane %v61, 5
  %v1099 = vsel %vm994, %v1097, %v1098
  %v1100 = vrot.slane %v62, 5
  %v1101 = vrot.slane %v1100, 4
  %v1102 = vrot.slane %v63, 5
  %v1103 = vsel %vm994, %v1101, %v1102
  %v1104 = vrot.slane %v1102, 4
  %v1105 = vrot.slane %v64, 5
  %v1106 = vsel %vm994, %v1104, %v1105
  %v1107 = vrot.slane %v71, 5
  %v1108 = vrot.slane %v1107, 4
  %v1109 = vrot.slane %v72, 5
  %v1110 = vsel %vm994, %v1108, %v1109
  %v1111 = vrot.slane %v1109, 4
  %v1112 = vrot.slane %v73, 5
  %v1113 = vsel %vm994, %v1111, %v1112
  %v1114 = vrot.slane %v74, 5
  %v1115 = vrot.slane %v1114, 4
  %v1116 = vrot.slane %v75, 5
  %v1117 = vsel %vm994, %v1115, %v1116
  %v1118 = vrot.slane %v1116, 4
  %v1119 = vrot.slane %v76, 5
  %v1120 = vsel %vm994, %v1118, %v1119
  %v1121 = vrot.slane %v77, 5
  %v1122 = vrot.slane %v1121, 4
  %v1123 = vrot.slane %v78, 5
  %v1124 = vsel %vm994, %v1122, %v1123
  %v1125 = vrot.slane %v1123, 4
  %v1126 = vrot.slane %v79, 5
  %v1127 = vsel %vm994, %v1125, %v1126
  %v1128 = vrot.slane %v80, 5
  %v1129 = vrot.slane %v1128, 4
  %v1130 = vrot.slane %v81, 5
  %v1131 = vsel %vm994, %v1129, %v1130
  %v1132 = vrot.slane %v1130, 4
  %v1133 = vrot.slane %v82, 5
  %v1134 = vsel %vm994, %v1132, %v1133
  %v1135 = vrot.slane %v83, 5
  %v1136 = vrot.slane %v1135, 4
  %v1137 = vrot.slane %v84, 5
  %v1138 = vsel %vm994, %v1136, %v1137
  %v1139 = vrot.slane %v1137, 4
  %v1140 = vrot.slane %v85, 5
  %v1141 = vsel %vm994, %v1139, %v1140
  %v1142 = vrot.slane %v86, 5
  %v1143 = vrot.slane %v1142, 4
  %v1144 = vrot.slane %v87, 5
  %v1145 = vsel %vm994, %v1143, %v1144
  %v1146 = vrot.slane %v1144, 4
  %v1147 = vrot.slane %v88, 5
  %v1148 = vsel %vm994, %v1146, %v1147
  %v1149 = vrot.slane %v89, 5
  %v1150 = vrot.slane %v1149, 4
  %v1151 = vrot.slane %v90, 5
  %v1152 = vsel %vm994, %v1150, %v1151
  %v1153 = vrot.slane %v1151, 4
  %v1154 = vrot.slane %v91, 5
  %v1155 = vsel %vm994, %v1153, %v1154
  %v1156 = vrot.slane %v92, 5
  %v1157 = vrot.slane %v1156, 4
  %v1158 = vrot.slane %v93, 5
  %v1159 = vsel %vm994, %v1157, %v1158
  %v1160 = vrot.slane %v1158, 4
  %v1161 = vrot.slane %v94, 5
  %v1162 = vsel %vm994, %v1160, %v1161
  %v1163 = vrot.slane %v95, 5
  %v1164 = vrot.slane %v1163, 4
  %v1165 = vrot.slane %v96, 5
  %v1166 = vsel %vm994, %v1164, %v1165
  %v1167 = vrot.slane %v1165, 4
  %v1168 = vrot.slane %v97, 5
  %v1169 = vsel %vm994, %v1167, %v1168
  %v1170 = vrot.slane %v98, 5
  %v1171 = vrot.slane %v1170, 4
  %v1172 = vrot.slane %v99, 5
  %v1173 = vsel %vm994, %v1171, %v1172
  %v1174 = vrot.slane %v1172, 4
  %v1175 = vrot.slane %v100, 5
  %v1176 = vsel %vm994, %v1174, %v1175
  %v1177 = vrot.slane %v101, 5
  %v1178 = vrot.slane %v1177, 4
  %v1179 = vrot.slane %v102, 5
  %v1180 = vsel %vm994, %v1178, %v1179
  %v1181 = vrot.slane %v1179, 4
  %v1182 = vrot.slane %v103, 5
  %v1183 = vsel %vm994, %v1181, %v1182
  %v1184 = vrot.slane %v104, 5
  %v1185 = vrot.slane %v1184, 4
  %v1186 = vrot.slane %v105, 5
  %v1187 = vsel %vm994, %v1185, %v1186
  %v1188 = vrot.slane %v1186, 4
  %v1189 = vrot.slane %v106, 5
  %v1190 = vsel %vm994, %v1188, %v1189
  %v1191 = vrot.slane %v107, 5
  %v1192 = vrot.slane %v1191, 4
  %v1193 = vrot.slane %v108, 5
  %v1194 = vsel %vm994, %v1192, %v1193
  %v1195 = vrot.slane %v1193, 4
  %v1196 = vrot.slane %v109, 5
  %v1197 = vsel %vm994, %v1195, %v1196
  %v1198 = vrot.slane %v110, 5
  %v1199 = vrot.slane %v1198, 4
  %v1200 = vrot.slane %v111, 5
  %v1201 = vsel %vm994, %v1199, %v1200
  %v1202 = vrot.slane %v1200, 4
  %v1203 = vrot.slane %v112, 5
  %v1204 = vsel %vm994, %v1202, %v1203
  %v1205 = vrot.slane %v113, 5
  %v1206 = vrot.slane %v1205, 4
  %v1207 = vrot.slane %v114, 5
  %v1208 = vsel %vm994, %v1206, %v1207
  %v1209 = vrot.slane %v1207, 4
  %v1210 = vrot.slane %v115, 5
  %v1211 = vsel %vm994, %v1209, %v1210
  %v1212 = vrot.slane %v116, 5
  %v1213 = vrot.slane %v1212, 4
  %v1214 = vrot.slane %v117, 5
  %v1215 = vsel %vm994, %v1213, %v1214
  %v1216 = vrot.slane %v1214, 4
  %v1217 = vrot.slane %v118, 5
  %v1218 = vsel %vm994, %v1216, %v1217
  %v1220 = vshrl.u32 %v65, 16
  %v1222 = vrot.slane %v1220, 4
  %v1223 = vshll.u32 %v65, 16
  %v1225 = vrot.slane %v1223, 5
  %v1226 = vor.u32 %v1222, %v1225
  %v1227 = vrot.slane %v1226, 4
  %v1229 = vshll.u32 %v66, 16
  %v1231 = vrot.slane %v1229, 5
  %v1232 = vsel %vm127, %v1227, %v1231
  %v1233 = vshrl.u32 %v66, 16
  %v1235 = vrot.slane %v1233, 4
  %v1236 = vor.u32 %v1235, %v1231
  %v1237 = vrot.slane %v1236, 4
  %v1239 = vshll.u32 %v67, 16
  %v1241 = vrot.slane %v1239, 5
  %v1242 = vsel %vm127, %v1237, %v1241
  %v1244 = vshrl.u32 %v119, 16
  %v1246 = vrot.slane %v1244, 4
  %v1247 = vshll.u32 %v119, 16
  %v1249 = vrot.slane %v1247, 5
  %v1250 = vor.u32 %v1246, %v1249
  %v1251 = vrot.slane %v1250, 4
  %v1253 = vshll.u32 %v120, 16
  %v1255 = vrot.slane %v1253, 5
  %v1256 = vsel %vm127, %v1251, %v1255
  %v1257 = vshrl.u32 %v120, 16
  %v1259 = vrot.slane %v1257, 4
  %v1260 = vor.u32 %v1259, %v1255
  %v1261 = vrot.slane %v1260, 4
  %v1263 = vshll.u32 %v121, 16
  %v1265 = vrot.slane %v1263, 5
  %v1266 = vsel %vm127, %v1261, %v1265
  %v1273 = vrot.slane %v65, 5
  %v1274 = vrot.slane %v1273, 4
  %v1275 = vrot.slane %v66, 5
  %v1276 = vsel %vm994, %v1274, %v1275
  %v1277 = vrot.slane %v1275, 4
  %v1278 = vrot.slane %v67, 5
  %v1279 = vsel %vm994, %v1277, %v1278
  %v1280 = vrot.slane %v119, 5
  %v1281 = vrot.slane %v1280, 4
  %v1282 = vrot.slane %v120, 5
  %v1283 = vsel %vm994, %v1281, %v1282
  %v1284 = vrot.slane %v1282, 4
  %v1285 = vrot.slane %v121, 5
  %v1286 = vsel %vm994, %v1284, %v1285
  %v1288 = vshrl.u32 %v68, 16
  %v1290 = vrot.slane %v1288, 4
  %v1291 = vshll.u32 %v68, 16
  %v1293 = vrot.slane %v1291, 5
  %v1294 = vor.u32 %v1290, %v1293
  %v1295 = vrot.slane %v1294, 4
  %v1297 = vshll.u32 %v69, 16
  %v1299 = vrot.slane %v1297, 5
  %v1300 = vsel %vm127, %v1295, %v1299
  %v1301 = vshrl.u32 %v69, 16
  %v1303 = vrot.slane %v1301, 4
  %v1304 = vor.u32 %v1303, %v1299
  %v1305 = vrot.slane %v1304, 4
  %v1307 = vshll.u32 %v70, 16
  %v1309 = vrot.slane %v1307, 5
  %v1310 = vsel %vm127, %v1305, %v1309
  %v1312 = vshrl.u32 %v122, 16
  %v1314 = vrot.slane %v1312, 4
  %v1315 = vshll.u32 %v122, 16
  %v1317 = vrot.slane %v1315, 5
  %v1318 = vor.u32 %v1314, %v1317
  %v1319 = vrot.slane %v1318, 4
  %v1321 = vshll.u32 %v123, 16
  %v1323 = vrot.slane %v1321, 5
  %v1324 = vsel %vm127, %v1319, %v1323
  %v1325 = vshrl.u32 %v123, 16
  %v1327 = vrot.slane %v1325, 4
  %v1328 = vor.u32 %v1327, %v1323
  %v1329 = vrot.slane %v1328, 4
  %v1331 = vshll.u32 %v124, 16
  %v1333 = vrot.slane %v1331, 5
  %v1334 = vsel %vm127, %v1329, %v1333
  %v1341 = vrot.slane %v68, 5
  %v1342 = vrot.slane %v1341, 4
  %v1343 = vrot.slane %v69, 5
  %v1344 = vsel %vm994, %v1342, %v1343
  %v1345 = vrot.slane %v1343, 4
  %v1346 = vrot.slane %v70, 5
  %v1347 = vsel %vm994, %v1345, %v1346
  %v1348 = vrot.slane %v122, 5
  %v1349 = vrot.slane %v1348, 4
  %v1350 = vrot.slane %v123, 5
  %v1351 = vsel %vm994, %v1349, %v1350
  %v1352 = vrot.slane %v1350, 4
  %v1353 = vrot.slane %v124, 5
  %v1354 = vsel %vm994, %v1352, %v1353
  %v1355 = vunpack.c.l.b16 %v17
  %v1356 = vunpack.c.l.b16 %v18
  %v1357 = vunpack.c.l.b16 %v20
  %v1358 = vunpack.c.l.b16 %v21
  %v1359 = vunpack.c.l.b16 %v23
  %v1360 = vunpack.c.l.b16 %v24
  %v1361 = vunpack.c.l.b16 %v26
  %v1362 = vunpack.c.l.b16 %v27
  %v1363 = vunpack.c.l.b16 %v29
  %v1364 = vunpack.c.l.b16 %v30
  %v1365 = vunpack.c.l.b16 %v32
  %v1366 = vunpack.c.l.b16 %v33
  %v1367 = vunpack.c.l.b16 %v35
  %v1368 = vunpack.c.l.b16 %v36
  %v1369 = vunpack.c.l.b16 %v38
  %v1370 = vunpack.c.l.b16 %v39
  %v1371 = vunpack.c.l.b16 %v41
  %v1372 = vunpack.c.l.b16 %v42
  %v1373 = vunpack.c.l.b16 %v44
  %v1374 = vunpack.c.l.b16 %v45
  %v1375 = vunpack.c.l.b16 %v47
  %v1376 = vunpack.c.l.b16 %v48
  %v1377 = vunpack.c.l.b16 %v50
  %v1378 = vunpack.c.l.b16 %v51
  %v1379 = vunpack.c.l.b16 %v53
  %v1380 = vunpack.c.l.b16 %v54
  %v1381 = vunpack.c.l.b16 %v56
  %v1382 = vunpack.c.l.b16 %v57
  %v1383 = vunpack.c.l.b16 %v59
  %v1384 = vunpack.c.l.b16 %v60
  %v1385 = vunpack.c.l.b16 %v62
  %v1386 = vunpack.c.l.b16 %v63
  %v1387 = vunpack.c.l.b16 %v71
  %v1388 = vunpack.c.l.b16 %v72
  %v1389 = vunpack.c.l.b16 %v74
  %v1390 = vunpack.c.l.b16 %v75
  %v1391 = vunpack.c.l.b16 %v77
  %v1392 = vunpack.c.l.b16 %v78
  %v1393 = vunpack.c.l.b16 %v80
  %v1394 = vunpack.c.l.b16 %v81
  %v1395 = vunpack.c.l.b16 %v83
  %v1396 = vunpack.c.l.b16 %v84
  %v1397 = vunpack.c.l.b16 %v86
  %v1398 = vunpack.c.l.b16 %v87
  %v1399 = vunpack.c.l.b16 %v89
  %v1400 = vunpack.c.l.b16 %v90
  %v1401 = vunpack.c.l.b16 %v92
  %v1402 = vunpack.c.l.b16 %v93
  %v1403 = vunpack.c.l.b16 %v95
  %v1404 = vunpack.c.l.b16 %v96
  %v1405 = vunpack.c.l.b16 %v98
  %v1406 = vunpack.c.l.b16 %v99
  %v1407 = vunpack.c.l.b16 %v101
  %v1408 = vunpack.c.l.b16 %v102
  %v1409 = vunpack.c.l.b16 %v104
  %v1410 = vunpack.c.l.b16 %v105
  %v1411 = vunpack.c.l.b16 %v107
  %v1412 = vunpack.c.l.b16 %v108
  %v1413 = vunpack.c.l.b16 %v110
  %v1414 = vunpack.c.l.b16 %v111
  %v1415 = vunpack.c.l.b16 %v113
  %v1416 = vunpack.c.l.b16 %v114
  %v1417 = vunpack.c.l.b16 %v116
  %v1418 = vunpack.c.l.b16 %v117
  %v1419 = vpack.c.b16 %v1356, %v1355
  %v1420 = vpack.c.b16 %v1358, %v1357
  %v1421 = vpack.c.b16 %v1360, %v1359
  %v1422 = vpack.c.b16 %v1362, %v1361
  %v1423 = vpack.c.b16 %v1364, %v1363
  %v1424 = vpack.c.b16 %v1366, %v1365
  %v1425 = vpack.c.b16 %v1368, %v1367
  %v1426 = vpack.c.b16 %v1370, %v1369
  %v1427 = vpack.c.b16 %v1372, %v1371
  %v1428 = vpack.c.b16 %v1374, %v1373
  %v1429 = vpack.c.b16 %v1376, %v1375
  %v1430 = vpack.c.b16 %v1378, %v1377
  %v1431 = vpack.c.b16 %v1380, %v1379
  %v1432 = vpack.c.b16 %v1382, %v1381
  %v1433 = vpack.c.b16 %v1384, %v1383
  %v1434 = vpack.c.b16 %v1386, %v1385
  %v1435 = vpack.c.b16 %v1388, %v1387
  %v1436 = vpack.c.b16 %v1390, %v1389
  %v1437 = vpack.c.b16 %v1392, %v1391
  %v1438 = vpack.c.b16 %v1394, %v1393
  %v1439 = vpack.c.b16 %v1396, %v1395
  %v1440 = vpack.c.b16 %v1398, %v1397
  %v1441 = vpack.c.b16 %v1400, %v1399
  %v1442 = vpack.c.b16 %v1402, %v1401
  %v1443 = vpack.c.b16 %v1404, %v1403
  %v1444 = vpack.c.b16 %v1406, %v1405
  %v1445 = vpack.c.b16 %v1408, %v1407
  %v1446 = vpack.c.b16 %v1410, %v1409
  %v1447 = vpack.c.b16 %v1412, %v1411
  %v1448 = vpack.c.b16 %v1414, %v1413
  %v1449 = vpack.c.b16 %v1416, %v1415
  %v1450 = vpack.c.b16 %v1418, %v1417
  %v1451 = vunpack.c.l.b16 %v141
  %v1452 = vunpack.c.l.b16 %v151
  %v1453 = vunpack.c.l.b16 %v165
  %v1454 = vunpack.c.l.b16 %v175
  %v1455 = vunpack.c.l.b16 %v189
  %v1456 = vunpack.c.l.b16 %v199
  %v1457 = vunpack.c.l.b16 %v213
  %v1458 = vunpack.c.l.b16 %v223
  %v1459 = vunpack.c.l.b16 %v237
  %v1460 = vunpack.c.l.b16 %v247
  %v1461 = vunpack.c.l.b16 %v261
  %v1462 = vunpack.c.l.b16 %v271
  %v1463 = vunpack.c.l.b16 %v285
  %v1464 = vunpack.c.l.b16 %v295
  %v1465 = vunpack.c.l.b16 %v309
  %v1466 = vunpack.c.l.b16 %v319
  %v1467 = vunpack.c.l.b16 %v333
  %v1468 = vunpack.c.l.b16 %v343
  %v1469 = vunpack.c.l.b16 %v357
  %v1470 = vunpack.c.l.b16 %v367
  %v1471 = vunpack.c.l.b16 %v381
  %v1472 = vunpack.c.l.b16 %v391
  %v1473 = vunpack.c.l.b16 %v405
  %v1474 = vunpack.c.l.b16 %v415
  %v1475 = vunpack.c.l.b16 %v429
  %v1476 = vunpack.c.l.b16 %v439
  %v1477 = vunpack.c.l.b16 %v453
  %v1478 = vunpack.c.l.b16 %v463
  %v1479 = vunpack.c.l.b16 %v477
  %v1480 = vunpack.c.l.b16 %v487
  %v1481 = vunpack.c.l.b16 %v501
  %v1482 = vunpack.c.l.b16 %v511
  %v1483 = vunpack.c.l.b16 %v525
  %v1484 = vunpack.c.l.b16 %v535
  %v1485 = vunpack.c.l.b16 %v549
  %v1486 = vunpack.c.l.b16 %v559
  %v1487 = vunpack.c.l.b16 %v573
  %v1488 = vunpack.c.l.b16 %v583
  %v1489 = vunpack.c.l.b16 %v597
  %v1490 = vunpack.c.l.b16 %v607
  %v1491 = vunpack.c.l.b16 %v621
  %v1492 = vunpack.c.l.b16 %v631
  %v1493 = vunpack.c.l.b16 %v645
  %v1494 = vunpack.c.l.b16 %v655
  %v1495 = vunpack.c.l.b16 %v669
  %v1496 = vunpack.c.l.b16 %v679
  %v1497 = vunpack.c.l.b16 %v693
  %v1498 = vunpack.c.l.b16 %v703
  %v1499 = vunpack.c.l.b16 %v717
  %v1500 = vunpack.c.l.b16 %v727
  %v1501 = vunpack.c.l.b16 %v741
  %v1502 = vunpack.c.l.b16 %v751
  %v1503 = vunpack.c.l.b16 %v765
  %v1504 = vunpack.c.l.b16 %v775
  %v1505 = vunpack.c.l.b16 %v789
  %v1506 = vunpack.c.l.b16 %v799
  %v1507 = vunpack.c.l.b16 %v813
  %v1508 = vunpack.c.l.b16 %v823
  %v1509 = vunpack.c.l.b16 %v837
  %v1510 = vunpack.c.l.b16 %v847
  %v1511 = vunpack.c.l.b16 %v861
  %v1512 = vunpack.c.l.b16 %v871
  %v1513 = vunpack.c.l.b16 %v885
  %v1514 = vunpack.c.l.b16 %v895
  %v1515 = vpack.c.b16 %v1452, %v1451
  %v1516 = vpack.c.b16 %v1454, %v1453
  %v1517 = vpack.c.b16 %v1456, %v1455
  %v1518 = vpack.c.b16 %v1458, %v1457
  %v1519 = vpack.c.b16 %v1460, %v1459
  %v1520 = vpack.c.b16 %v1462, %v1461
  %v1521 = vpack.c.b16 %v1464, %v1463
  %v1522 = vpack.c.b16 %v1466, %v1465
  %v1523 = vpack.c.b16 %v1468, %v1467
  %v1524 = vpack.c.b16 %v1470, %v1469
  %v1525 = vpack.c.b16 %v1472, %v1471
  %v1526 = vpack.c.b16 %v1474, %v1473
  %v1527 = vpack.c.b16 %v1476, %v1475
  %v1528 = vpack.c.b16 %v1478, %v1477
  %v1529 = vpack.c.b16 %v1480, %v1479
  %v1530 = vpack.c.b16 %v1482, %v1481
  %v1531 = vpack.c.b16 %v1484, %v1483
  %v1532 = vpack.c.b16 %v1486, %v1485
  %v1533 = vpack.c.b16 %v1488, %v1487
  %v1534 = vpack.c.b16 %v1490, %v1489
  %v1535 = vpack.c.b16 %v1492, %v1491
  %v1536 = vpack.c.b16 %v1494, %v1493
  %v1537 = vpack.c.b16 %v1496, %v1495
  %v1538 = vpack.c.b16 %v1498, %v1497
  %v1539 = vpack.c.b16 %v1500, %v1499
  %v1540 = vpack.c.b16 %v1502, %v1501
  %v1541 = vpack.c.b16 %v1504, %v1503
  %v1542 = vpack.c.b16 %v1506, %v1505
  %v1543 = vpack.c.b16 %v1508, %v1507
  %v1544 = vpack.c.b16 %v1510, %v1509
  %v1545 = vpack.c.b16 %v1512, %v1511
  %v1546 = vpack.c.b16 %v1514, %v1513
  %1547 = vrot.lane.b32.xlu0 %v1515, 4
  %v1548 = vpop.permute.xlu0 %1547
  %1549 = vrot.lane.b32.xlu0 %v1516, 4
  %v1550 = vpop.permute.xlu0 %1549
  %1551 = vrot.lane.b32.xlu0 %v1517, 4
  %v1552 = vpop.permute.xlu0 %1551
  %1553 = vrot.lane.b32.xlu0 %v1518, 4
  %v1554 = vpop.permute.xlu0 %1553
  %1555 = vrot.lane.b32.xlu0 %v1519, 4
  %v1556 = vpop.permute.xlu0 %1555
  %1557 = vrot.lane.b32.xlu0 %v1520, 4
  %v1558 = vpop.permute.xlu0 %1557
  %1559 = vrot.lane.b32.xlu0 %v1521, 4
  %v1560 = vpop.permute.xlu0 %1559
  %1561 = vrot.lane.b32.xlu0 %v1522, 4
  %v1562 = vpop.permute.xlu0 %1561
  %1563 = vrot.lane.b32.xlu0 %v1523, 4
  %v1564 = vpop.permute.xlu0 %1563
  %1565 = vrot.lane.b32.xlu0 %v1524, 4
  %v1566 = vpop.permute.xlu0 %1565
  %1567 = vrot.lane.b32.xlu0 %v1525, 4
  %v1568 = vpop.permute.xlu0 %1567
  %1569 = vrot.lane.b32.xlu0 %v1526, 4
  %v1570 = vpop.permute.xlu0 %1569
  %1571 = vrot.lane.b32.xlu0 %v1527, 4
  %v1572 = vpop.permute.xlu0 %1571
  %1573 = vrot.lane.b32.xlu0 %v1528, 4
  %v1574 = vpop.permute.xlu0 %1573
  %1575 = vrot.lane.b32.xlu0 %v1529, 4
  %v1576 = vpop.permute.xlu0 %1575
  %1577 = vrot.lane.b32.xlu0 %v1530, 4
  %v1578 = vpop.permute.xlu0 %1577
  %1579 = vrot.lane.b32.xlu0 %v1531, 4
  %v1580 = vpop.permute.xlu0 %1579
  %1581 = vrot.lane.b32.xlu0 %v1532, 4
  %v1582 = vpop.permute.xlu0 %1581
  %1583 = vrot.lane.b32.xlu0 %v1533, 4
  %v1584 = vpop.permute.xlu0 %1583
  %1585 = vrot.lane.b32.xlu0 %v1534, 4
  %v1586 = vpop.permute.xlu0 %1585
  %1587 = vrot.lane.b32.xlu0 %v1535, 4
  %v1588 = vpop.permute.xlu0 %1587
  %1589 = vrot.lane.b32.xlu0 %v1536, 4
  %v1590 = vpop.permute.xlu0 %1589
  %1591 = vrot.lane.b32.xlu0 %v1537, 4
  %v1592 = vpop.permute.xlu0 %1591
  %1593 = vrot.lane.b32.xlu0 %v1538, 4
  %v1594 = vpop.permute.xlu0 %1593
  %1595 = vrot.lane.b32.xlu0 %v1539, 4
  %v1596 = vpop.permute.xlu0 %1595
  %1597 = vrot.lane.b32.xlu0 %v1540, 4
  %v1598 = vpop.permute.xlu0 %1597
  %1599 = vrot.lane.b32.xlu0 %v1541, 4
  %v1600 = vpop.permute.xlu0 %1599
  %1601 = vrot.lane.b32.xlu0 %v1542, 4
  %v1602 = vpop.permute.xlu0 %1601
  %1603 = vrot.lane.b32.xlu0 %v1543, 4
  %v1604 = vpop.permute.xlu0 %1603
  %1605 = vrot.lane.b32.xlu0 %v1544, 4
  %v1606 = vpop.permute.xlu0 %1605
  %1607 = vrot.lane.b32.xlu0 %v1545, 4
  %v1608 = vpop.permute.xlu0 %1607
  %1609 = vrot.lane.b32.xlu0 %v1546, 4
  %v1610 = vpop.permute.xlu0 %1609
  %v1611 = vunpack.c.l.b16 %v998
  %v1612 = vunpack.c.l.b16 %v1001
  %v1613 = vunpack.c.l.b16 %v1005
  %v1614 = vunpack.c.l.b16 %v1008
  %v1615 = vunpack.c.l.b16 %v1012
  %v1616 = vunpack.c.l.b16 %v1015
  %v1617 = vunpack.c.l.b16 %v1019
  %v1618 = vunpack.c.l.b16 %v1022
  %v1619 = vunpack.c.l.b16 %v1026
  %v1620 = vunpack.c.l.b16 %v1029
  %v1621 = vunpack.c.l.b16 %v1033
  %v1622 = vunpack.c.l.b16 %v1036
  %v1623 = vunpack.c.l.b16 %v1040
  %v1624 = vunpack.c.l.b16 %v1043
  %v1625 = vunpack.c.l.b16 %v1047
  %v1626 = vunpack.c.l.b16 %v1050
  %v1627 = vunpack.c.l.b16 %v1054
  %v1628 = vunpack.c.l.b16 %v1057
  %v1629 = vunpack.c.l.b16 %v1061
  %v1630 = vunpack.c.l.b16 %v1064
  %v1631 = vunpack.c.l.b16 %v1068
  %v1632 = vunpack.c.l.b16 %v1071
  %v1633 = vunpack.c.l.b16 %v1075
  %v1634 = vunpack.c.l.b16 %v1078
  %v1635 = vunpack.c.l.b16 %v1082
  %v1636 = vunpack.c.l.b16 %v1085
  %v1637 = vunpack.c.l.b16 %v1089
  %v1638 = vunpack.c.l.b16 %v1092
  %v1639 = vunpack.c.l.b16 %v1096
  %v1640 = vunpack.c.l.b16 %v1099
  %v1641 = vunpack.c.l.b16 %v1103
  %v1642 = vunpack.c.l.b16 %v1106
  %v1643 = vunpack.c.l.b16 %v1110
  %v1644 = vunpack.c.l.b16 %v1113
  %v1645 = vunpack.c.l.b16 %v1117
  %v1646 = vunpack.c.l.b16 %v1120
  %v1647 = vunpack.c.l.b16 %v1124
  %v1648 = vunpack.c.l.b16 %v1127
  %v1649 = vunpack.c.l.b16 %v1131
  %v1650 = vunpack.c.l.b16 %v1134
  %v1651 = vunpack.c.l.b16 %v1138
  %v1652 = vunpack.c.l.b16 %v1141
  %v1653 = vunpack.c.l.b16 %v1145
  %v1654 = vunpack.c.l.b16 %v1148
  %v1655 = vunpack.c.l.b16 %v1152
  %v1656 = vunpack.c.l.b16 %v1155
  %v1657 = vunpack.c.l.b16 %v1159
  %v1658 = vunpack.c.l.b16 %v1162
  %v1659 = vunpack.c.l.b16 %v1166
  %v1660 = vunpack.c.l.b16 %v1169
  %v1661 = vunpack.c.l.b16 %v1173
  %v1662 = vunpack.c.l.b16 %v1176
  %v1663 = vunpack.c.l.b16 %v1180
  %v1664 = vunpack.c.l.b16 %v1183
  %v1665 = vunpack.c.l.b16 %v1187
  %v1666 = vunpack.c.l.b16 %v1190
  %v1667 = vunpack.c.l.b16 %v1194
  %v1668 = vunpack.c.l.b16 %v1197
  %v1669 = vunpack.c.l.b16 %v1201
  %v1670 = vunpack.c.l.b16 %v1204
  %v1671 = vunpack.c.l.b16 %v1208
  %v1672 = vunpack.c.l.b16 %v1211
  %v1673 = vunpack.c.l.b16 %v1215
  %v1674 = vunpack.c.l.b16 %v1218
  %v1675 = vpack.c.b16 %v1612, %v1611
  %v1676 = vpack.c.b16 %v1614, %v1613
  %v1677 = vpack.c.b16 %v1616, %v1615
  %v1678 = vpack.c.b16 %v1618, %v1617
  %v1679 = vpack.c.b16 %v1620, %v1619
  %v1680 = vpack.c.b16 %v1622, %v1621
  %v1681 = vpack.c.b16 %v1624, %v1623
  %v1682 = vpack.c.b16 %v1626, %v1625
  %v1683 = vpack.c.b16 %v1628, %v1627
  %v1684 = vpack.c.b16 %v1630, %v1629
  %v1685 = vpack.c.b16 %v1632, %v1631
  %v1686 = vpack.c.b16 %v1634, %v1633
  %v1687 = vpack.c.b16 %v1636, %v1635
  %v1688 = vpack.c.b16 %v1638, %v1637
  %v1689 = vpack.c.b16 %v1640, %v1639
  %v1690 = vpack.c.b16 %v1642, %v1641
  %v1691 = vpack.c.b16 %v1644, %v1643
  %v1692 = vpack.c.b16 %v1646, %v1645
  %v1693 = vpack.c.b16 %v1648, %v1647
  %v1694 = vpack.c.b16 %v1650, %v1649
  %v1695 = vpack.c.b16 %v1652, %v1651
  %v1696 = vpack.c.b16 %v1654, %v1653
  %v1697 = vpack.c.b16 %v1656, %v1655
  %v1698 = vpack.c.b16 %v1658, %v1657
  %v1699 = vpack.c.b16 %v1660, %v1659
  %v1700 = vpack.c.b16 %v1662, %v1661
  %v1701 = vpack.c.b16 %v1664, %v1663
  %v1702 = vpack.c.b16 %v1666, %v1665
  %v1703 = vpack.c.b16 %v1668, %v1667
  %v1704 = vpack.c.b16 %v1670, %v1669
  %v1705 = vpack.c.b16 %v1672, %v1671
  %v1706 = vpack.c.b16 %v1674, %v1673
  %1707 = vrot.lane.b32.xlu0 %v1675, 8
  %v1708 = vpop.permute.xlu0 %1707
  %1709 = vrot.lane.b32.xlu0 %v1676, 8
  %v1710 = vpop.permute.xlu0 %1709
  %1711 = vrot.lane.b32.xlu0 %v1677, 8
  %v1712 = vpop.permute.xlu0 %1711
  %1713 = vrot.lane.b32.xlu0 %v1678, 8
  %v1714 = vpop.permute.xlu0 %1713
  %1715 = vrot.lane.b32.xlu0 %v1679, 8
  %v1716 = vpop.permute.xlu0 %1715
  %1717 = vrot.lane.b32.xlu0 %v1680, 8
  %v1718 = vpop.permute.xlu0 %1717
  %1719 = vrot.lane.b32.xlu0 %v1681, 8
  %v1720 = vpop.permute.xlu0 %1719
  %1721 = vrot.lane.b32.xlu0 %v1682, 8
  %v1722 = vpop.permute.xlu0 %1721
  %1723 = vrot.lane.b32.xlu0 %v1683, 8
  %v1724 = vpop.permute.xlu0 %1723
  %1725 = vrot.lane.b32.xlu0 %v1684, 8
  %v1726 = vpop.permute.xlu0 %1725
  %1727 = vrot.lane.b32.xlu0 %v1685, 8
  %v1728 = vpop.permute.xlu0 %1727
  %1729 = vrot.lane.b32.xlu0 %v1686, 8
  %v1730 = vpop.permute.xlu0 %1729
  %1731 = vrot.lane.b32.xlu0 %v1687, 8
  %v1732 = vpop.permute.xlu0 %1731
  %1733 = vrot.lane.b32.xlu0 %v1688, 8
  %v1734 = vpop.permute.xlu0 %1733
  %1735 = vrot.lane.b32.xlu0 %v1689, 8
  %v1736 = vpop.permute.xlu0 %1735
  %1737 = vrot.lane.b32.xlu0 %v1690, 8
  %v1738 = vpop.permute.xlu0 %1737
  %1739 = vrot.lane.b32.xlu0 %v1691, 8
  %v1740 = vpop.permute.xlu0 %1739
  %1741 = vrot.lane.b32.xlu0 %v1692, 8
  %v1742 = vpop.permute.xlu0 %1741
  %1743 = vrot.lane.b32.xlu0 %v1693, 8
  %v1744 = vpop.permute.xlu0 %1743
  %1745 = vrot.lane.b32.xlu0 %v1694, 8
  %v1746 = vpop.permute.xlu0 %1745
  %1747 = vrot.lane.b32.xlu0 %v1695, 8
  %v1748 = vpop.permute.xlu0 %1747
  %1749 = vrot.lane.b32.xlu0 %v1696, 8
  %v1750 = vpop.permute.xlu0 %1749
  %1751 = vrot.lane.b32.xlu0 %v1697, 8
  %v1752 = vpop.permute.xlu0 %1751
  %1753 = vrot.lane.b32.xlu0 %v1698, 8
  %v1754 = vpop.permute.xlu0 %1753
  %1755 = vrot.lane.b32.xlu0 %v1699, 8
  %v1756 = vpop.permute.xlu0 %1755
  %1757 = vrot.lane.b32.xlu0 %v1700, 8
  %v1758 = vpop.permute.xlu0 %1757
  %1759 = vrot.lane.b32.xlu0 %v1701, 8
  %v1760 = vpop.permute.xlu0 %1759
  %1761 = vrot.lane.b32.xlu0 %v1702, 8
  %v1762 = vpop.permute.xlu0 %1761
  %1763 = vrot.lane.b32.xlu0 %v1703, 8
  %v1764 = vpop.permute.xlu0 %1763
  %1765 = vrot.lane.b32.xlu0 %v1704, 8
  %v1766 = vpop.permute.xlu0 %1765
  %1767 = vrot.lane.b32.xlu0 %v1705, 8
  %v1768 = vpop.permute.xlu0 %1767
  %1769 = vrot.lane.b32.xlu0 %v1706, 8
  %v1770 = vpop.permute.xlu0 %1769
  %v1771 = vunpack.c.l.b16 %v65
  %v1772 = vunpack.c.l.b16 %v66
  %v1773 = vunpack.c.l.b16 %v119
  %v1774 = vunpack.c.l.b16 %v120
  %v1775 = vpack.c.b16 %v1772, %v1771
  %v1776 = vpack.c.b16 %v1774, %v1773
  %1777 = vrot.lane.b32.xlu0 %v1420, 12
  %v1778 = vpop.permute.xlu0 %1777
  %1779 = vrot.lane.b32.xlu0 %v1421, 12
  %v1780 = vpop.permute.xlu0 %1779
  %1781 = vrot.lane.b32.xlu0 %v1422, 12
  %v1782 = vpop.permute.xlu0 %1781
  %1783 = vrot.lane.b32.xlu0 %v1423, 12
  %v1784 = vpop.permute.xlu0 %1783
  %1785 = vrot.lane.b32.xlu0 %v1424, 12
  %v1786 = vpop.permute.xlu0 %1785
  %1787 = vrot.lane.b32.xlu0 %v1425, 12
  %v1788 = vpop.permute.xlu0 %1787
  %1789 = vrot.lane.b32.xlu0 %v1426, 12
  %v1790 = vpop.permute.xlu0 %1789
  %1791 = vrot.lane.b32.xlu0 %v1427, 12
  %v1792 = vpop.permute.xlu0 %1791
  %1793 = vrot.lane.b32.xlu0 %v1428, 12
  %v1794 = vpop.permute.xlu0 %1793
  %1795 = vrot.lane.b32.xlu0 %v1429, 12
  %v1796 = vpop.permute.xlu0 %1795
  %1797 = vrot.lane.b32.xlu0 %v1430, 12
  %v1798 = vpop.permute.xlu0 %1797
  %1799 = vrot.lane.b32.xlu0 %v1431, 12
  %v1800 = vpop.permute.xlu0 %1799
  %1801 = vrot.lane.b32.xlu0 %v1432, 12
  %v1802 = vpop.permute.xlu0 %1801
  %1803 = vrot.lane.b32.xlu0 %v1433, 12
  %v1804 = vpop.permute.xlu0 %1803
  %1805 = vrot.lane.b32.xlu0 %v1434, 12
  %v1806 = vpop.permute.xlu0 %1805
  %1807 = vrot.lane.b32.xlu0 %v1775, 12
  %v1808 = vpop.permute.xlu0 %1807
  %1809 = vrot.lane.b32.xlu0 %v1436, 12
  %v1810 = vpop.permute.xlu0 %1809
  %1811 = vrot.lane.b32.xlu0 %v1437, 12
  %v1812 = vpop.permute.xlu0 %1811
  %1813 = vrot.lane.b32.xlu0 %v1438, 12
  %v1814 = vpop.permute.xlu0 %1813
  %1815 = vrot.lane.b32.xlu0 %v1439, 12
  %v1816 = vpop.permute.xlu0 %1815
  %1817 = vrot.lane.b32.xlu0 %v1440, 12
  %v1818 = vpop.permute.xlu0 %1817
  %1819 = vrot.lane.b32.xlu0 %v1441, 12
  %v1820 = vpop.permute.xlu0 %1819
  %1821 = vrot.lane.b32.xlu0 %v1442, 12
  %v1822 = vpop.permute.xlu0 %1821
  %1823 = vrot.lane.b32.xlu0 %v1443, 12
  %v1824 = vpop.permute.xlu0 %1823
  %1825 = vrot.lane.b32.xlu0 %v1444, 12
  %v1826 = vpop.permute.xlu0 %1825
  %1827 = vrot.lane.b32.xlu0 %v1445, 12
  %v1828 = vpop.permute.xlu0 %1827
  %1829 = vrot.lane.b32.xlu0 %v1446, 12
  %v1830 = vpop.permute.xlu0 %1829
  %1831 = vrot.lane.b32.xlu0 %v1447, 12
  %v1832 = vpop.permute.xlu0 %1831
  %1833 = vrot.lane.b32.xlu0 %v1448, 12
  %v1834 = vpop.permute.xlu0 %1833
  %1835 = vrot.lane.b32.xlu0 %v1449, 12
  %v1836 = vpop.permute.xlu0 %1835
  %1837 = vrot.lane.b32.xlu0 %v1450, 12
  %v1838 = vpop.permute.xlu0 %1837
  %1839 = vrot.lane.b32.xlu0 %v1776, 12
  %v1840 = vpop.permute.xlu0 %1839
  %v1841 = vunpack.c.l.b16 %v1232
  %v1842 = vunpack.c.l.b16 %v1242
  %v1843 = vunpack.c.l.b16 %v1256
  %v1844 = vunpack.c.l.b16 %v1266
  %v1845 = vpack.c.b16 %v1842, %v1841
  %v1846 = vpack.c.b16 %v1844, %v1843
  %1847 = vrot.lane.b32.xlu0 %v1516, 16
  %v1848 = vpop.permute.xlu0 %1847
  %1849 = vrot.lane.b32.xlu0 %v1517, 16
  %v1850 = vpop.permute.xlu0 %1849
  %1851 = vrot.lane.b32.xlu0 %v1518, 16
  %v1852 = vpop.permute.xlu0 %1851
  %1853 = vrot.lane.b32.xlu0 %v1519, 16
  %v1854 = vpop.permute.xlu0 %1853
  %1855 = vrot.lane.b32.xlu0 %v1520, 16
  %v1856 = vpop.permute.xlu0 %1855
  %1857 = vrot.lane.b32.xlu0 %v1521, 16
  %v1858 = vpop.permute.xlu0 %1857
  %1859 = vrot.lane.b32.xlu0 %v1522, 16
  %v1860 = vpop.permute.xlu0 %1859
  %1861 = vrot.lane.b32.xlu0 %v1523, 16
  %v1862 = vpop.permute.xlu0 %1861
  %1863 = vrot.lane.b32.xlu0 %v1524, 16
  %v1864 = vpop.permute.xlu0 %1863
  %1865 = vrot.lane.b32.xlu0 %v1525, 16
  %v1866 = vpop.permute.xlu0 %1865
  %1867 = vrot.lane.b32.xlu0 %v1526, 16
  %v1868 = vpop.permute.xlu0 %1867
  %1869 = vrot.lane.b32.xlu0 %v1527, 16
  %v1870 = vpop.permute.xlu0 %1869
  %1871 = vrot.lane.b32.xlu0 %v1528, 16
  %v1872 = vpop.permute.xlu0 %1871
  %1873 = vrot.lane.b32.xlu0 %v1529, 16
  %v1874 = vpop.permute.xlu0 %1873
  %1875 = vrot.lane.b32.xlu0 %v1530, 16
  %v1876 = vpop.permute.xlu0 %1875
  %1877 = vrot.lane.b32.xlu0 %v1845, 16
  %v1878 = vpop.permute.xlu0 %1877
  %1879 = vrot.lane.b32.xlu0 %v1532, 16
  %v1880 = vpop.permute.xlu0 %1879
  %1881 = vrot.lane.b32.xlu0 %v1533, 16
  %v1882 = vpop.permute.xlu0 %1881
  %1883 = vrot.lane.b32.xlu0 %v1534, 16
  %v1884 = vpop.permute.xlu0 %1883
  %1885 = vrot.lane.b32.xlu0 %v1535, 16
  %v1886 = vpop.permute.xlu0 %1885
  %1887 = vrot.lane.b32.xlu0 %v1536, 16
  %v1888 = vpop.permute.xlu0 %1887
  %1889 = vrot.lane.b32.xlu0 %v1537, 16
  %v1890 = vpop.permute.xlu0 %1889
  %1891 = vrot.lane.b32.xlu0 %v1538, 16
  %v1892 = vpop.permute.xlu0 %1891
  %1893 = vrot.lane.b32.xlu0 %v1539, 16
  %v1894 = vpop.permute.xlu0 %1893
  %1895 = vrot.lane.b32.xlu0 %v1540, 16
  %v1896 = vpop.permute.xlu0 %1895
  %1897 = vrot.lane.b32.xlu0 %v1541, 16
  %v1898 = vpop.permute.xlu0 %1897
  %1899 = vrot.lane.b32.xlu0 %v1542, 16
  %v1900 = vpop.permute.xlu0 %1899
  %1901 = vrot.lane.b32.xlu0 %v1543, 16
  %v1902 = vpop.permute.xlu0 %1901
  %1903 = vrot.lane.b32.xlu0 %v1544, 16
  %v1904 = vpop.permute.xlu0 %1903
  %1905 = vrot.lane.b32.xlu0 %v1545, 16
  %v1906 = vpop.permute.xlu0 %1905
  %1907 = vrot.lane.b32.xlu0 %v1546, 16
  %v1908 = vpop.permute.xlu0 %1907
  %1909 = vrot.lane.b32.xlu0 %v1846, 16
  %v1910 = vpop.permute.xlu0 %1909
  %v1911 = vunpack.c.l.b16 %v1276
  %v1912 = vunpack.c.l.b16 %v1279
  %v1913 = vunpack.c.l.b16 %v1283
  %v1914 = vunpack.c.l.b16 %v1286
  %v1915 = vpack.c.b16 %v1912, %v1911
  %v1916 = vpack.c.b16 %v1914, %v1913
  %1917 = vrot.lane.b32.xlu0 %v1676, 20
  %v1918 = vpop.permute.xlu0 %1917
  %1919 = vrot.lane.b32.xlu0 %v1677, 20
  %v1920 = vpop.permute.xlu0 %1919
  %1921 = vrot.lane.b32.xlu0 %v1678, 20
  %v1922 = vpop.permute.xlu0 %1921
  %1923 = vrot.lane.b32.xlu0 %v1679, 20
  %v1924 = vpop.permute.xlu0 %1923
  %1925 = vrot.lane.b32.xlu0 %v1680, 20
  %v1926 = vpop.permute.xlu0 %1925
  %1927 = vrot.lane.b32.xlu0 %v1681, 20
  %v1928 = vpop.permute.xlu0 %1927
  %1929 = vrot.lane.b32.xlu0 %v1682, 20
  %v1930 = vpop.permute.xlu0 %1929
  %1931 = vrot.lane.b32.xlu0 %v1683, 20
  %v1932 = vpop.permute.xlu0 %1931
  %1933 = vrot.lane.b32.xlu0 %v1684, 20
  %v1934 = vpop.permute.xlu0 %1933
  %1935 = vrot.lane.b32.xlu0 %v1685, 20
  %v1936 = vpop.permute.xlu0 %1935
  %1937 = vrot.lane.b32.xlu0 %v1686, 20
  %v1938 = vpop.permute.xlu0 %1937
  %1939 = vrot.lane.b32.xlu0 %v1687, 20
  %v1940 = vpop.permute.xlu0 %1939
  %1941 = vrot.lane.b32.xlu0 %v1688, 20
  %v1942 = vpop.permute.xlu0 %1941
  %1943 = vrot.lane.b32.xlu0 %v1689, 20
  %v1944 = vpop.permute.xlu0 %1943
  %1945 = vrot.lane.b32.xlu0 %v1690, 20
  %v1946 = vpop.permute.xlu0 %1945
  %1947 = vrot.lane.b32.xlu0 %v1915, 20
  %v1948 = vpop.permute.xlu0 %1947
  %1949 = vrot.lane.b32.xlu0 %v1692, 20
  %v1950 = vpop.permute.xlu0 %1949
  %1951 = vrot.lane.b32.xlu0 %v1693, 20
  %v1952 = vpop.permute.xlu0 %1951
  %1953 = vrot.lane.b32.xlu0 %v1694, 20
  %v1954 = vpop.permute.xlu0 %1953
  %1955 = vrot.lane.b32.xlu0 %v1695, 20
  %v1956 = vpop.permute.xlu0 %1955
  %1957 = vrot.lane.b32.xlu0 %v1696, 20
  %v1958 = vpop.permute.xlu0 %1957
  %1959 = vrot.lane.b32.xlu0 %v1697, 20
  %v1960 = vpop.permute.xlu0 %1959
  %1961 = vrot.lane.b32.xlu0 %v1698, 20
  %v1962 = vpop.permute.xlu0 %1961
  %1963 = vrot.lane.b32.xlu0 %v1699, 20
  %v1964 = vpop.permute.xlu0 %1963
  %1965 = vrot.lane.b32.xlu0 %v1700, 20
  %v1966 = vpop.permute.xlu0 %1965
  %1967 = vrot.lane.b32.xlu0 %v1701, 20
  %v1968 = vpop.permute.xlu0 %1967
  %1969 = vrot.lane.b32.xlu0 %v1702, 20
  %v1970 = vpop.permute.xlu0 %1969
  %1971 = vrot.lane.b32.xlu0 %v1703, 20
  %v1972 = vpop.permute.xlu0 %1971
  %1973 = vrot.lane.b32.xlu0 %v1704, 20
  %v1974 = vpop.permute.xlu0 %1973
  %1975 = vrot.lane.b32.xlu0 %v1705, 20
  %v1976 = vpop.permute.xlu0 %1975
  %1977 = vrot.lane.b32.xlu0 %v1706, 20
  %v1978 = vpop.permute.xlu0 %1977
  %1979 = vrot.lane.b32.xlu0 %v1916, 20
  %v1980 = vpop.permute.xlu0 %1979
  %v1981 = vunpack.c.l.b16 %v68
  %v1982 = vunpack.c.l.b16 %v69
  %v1983 = vunpack.c.l.b16 %v122
  %v1984 = vunpack.c.l.b16 %v123
  %v1985 = vpack.c.b16 %v1982, %v1981
  %v1986 = vpack.c.b16 %v1984, %v1983
  %1987 = vrot.lane.b32.xlu0 %v1421, 24
  %v1988 = vpop.permute.xlu0 %1987
  %1989 = vrot.lane.b32.xlu0 %v1422, 24
  %v1990 = vpop.permute.xlu0 %1989
  %1991 = vrot.lane.b32.xlu0 %v1423, 24
  %v1992 = vpop.permute.xlu0 %1991
  %1993 = vrot.lane.b32.xlu0 %v1424, 24
  %v1994 = vpop.permute.xlu0 %1993
  %1995 = vrot.lane.b32.xlu0 %v1425, 24
  %v1996 = vpop.permute.xlu0 %1995
  %1997 = vrot.lane.b32.xlu0 %v1426, 24
  %v1998 = vpop.permute.xlu0 %1997
  %1999 = vrot.lane.b32.xlu0 %v1427, 24
  %v2000 = vpop.permute.xlu0 %1999
  %2001 = vrot.lane.b32.xlu0 %v1428, 24
  %v2002 = vpop.permute.xlu0 %2001
  %2003 = vrot.lane.b32.xlu0 %v1429, 24
  %v2004 = vpop.permute.xlu0 %2003
  %2005 = vrot.lane.b32.xlu0 %v1430, 24
  %v2006 = vpop.permute.xlu0 %2005
  %2007 = vrot.lane.b32.xlu0 %v1431, 24
  %v2008 = vpop.permute.xlu0 %2007
  %2009 = vrot.lane.b32.xlu0 %v1432, 24
  %v2010 = vpop.permute.xlu0 %2009
  %2011 = vrot.lane.b32.xlu0 %v1433, 24
  %v2012 = vpop.permute.xlu0 %2011
  %2013 = vrot.lane.b32.xlu0 %v1434, 24
  %v2014 = vpop.permute.xlu0 %2013
  %2015 = vrot.lane.b32.xlu0 %v1775, 24
  %v2016 = vpop.permute.xlu0 %2015
  %2017 = vrot.lane.b32.xlu0 %v1985, 24
  %v2018 = vpop.permute.xlu0 %2017
  %2019 = vrot.lane.b32.xlu0 %v1437, 24
  %v2020 = vpop.permute.xlu0 %2019
  %2021 = vrot.lane.b32.xlu0 %v1438, 24
  %v2022 = vpop.permute.xlu0 %2021
  %2023 = vrot.lane.b32.xlu0 %v1439, 24
  %v2024 = vpop.permute.xlu0 %2023
  %2025 = vrot.lane.b32.xlu0 %v1440, 24
  %v2026 = vpop.permute.xlu0 %2025
  %2027 = vrot.lane.b32.xlu0 %v1441, 24
  %v2028 = vpop.permute.xlu0 %2027
  %2029 = vrot.lane.b32.xlu0 %v1442, 24
  %v2030 = vpop.permute.xlu0 %2029
  %2031 = vrot.lane.b32.xlu0 %v1443, 24
  %v2032 = vpop.permute.xlu0 %2031
  %2033 = vrot.lane.b32.xlu0 %v1444, 24
  %v2034 = vpop.permute.xlu0 %2033
  %2035 = vrot.lane.b32.xlu0 %v1445, 24
  %v2036 = vpop.permute.xlu0 %2035
  %2037 = vrot.lane.b32.xlu0 %v1446, 24
  %v2038 = vpop.permute.xlu0 %2037
  %2039 = vrot.lane.b32.xlu0 %v1447, 24
  %v2040 = vpop.permute.xlu0 %2039
  %2041 = vrot.lane.b32.xlu0 %v1448, 24
  %v2042 = vpop.permute.xlu0 %2041
  %2043 = vrot.lane.b32.xlu0 %v1449, 24
  %v2044 = vpop.permute.xlu0 %2043
  %2045 = vrot.lane.b32.xlu0 %v1450, 24
  %v2046 = vpop.permute.xlu0 %2045
  %2047 = vrot.lane.b32.xlu0 %v1776, 24
  %v2048 = vpop.permute.xlu0 %2047
  %2049 = vrot.lane.b32.xlu0 %v1986, 24
  %v2050 = vpop.permute.xlu0 %2049
  %v2051 = vunpack.c.l.b16 %v1300
  %v2052 = vunpack.c.l.b16 %v1310
  %v2053 = vunpack.c.l.b16 %v1324
  %v2054 = vunpack.c.l.b16 %v1334
  %v2055 = vpack.c.b16 %v2052, %v2051
  %v2056 = vpack.c.b16 %v2054, %v2053
  %2057 = vrot.lane.b32.xlu0 %v1517, 28
  %v2058 = vpop.permute.xlu0 %2057
  %2059 = vrot.lane.b32.xlu0 %v1518, 28
  %v2060 = vpop.permute.xlu0 %2059
  %2061 = vrot.lane.b32.xlu0 %v1519, 28
  %v2062 = vpop.permute.xlu0 %2061
  %2063 = vrot.lane.b32.xlu0 %v1520, 28
  %v2064 = vpop.permute.xlu0 %2063
  %2065 = vrot.lane.b32.xlu0 %v1521, 28
  %v2066 = vpop.permute.xlu0 %2065
  %2067 = vrot.lane.b32.xlu0 %v1522, 28
  %v2068 = vpop.permute.xlu0 %2067
  %2069 = vrot.lane.b32.xlu0 %v1523, 28
  %v2070 = vpop.permute.xlu0 %2069
  %2071 = vrot.lane.b32.xlu0 %v1524, 28
  %v2072 = vpop.permute.xlu0 %2071
  %2073 = vrot.lane.b32.xlu0 %v1525, 28
  %v2074 = vpop.permute.xlu0 %2073
  %2075 = vrot.lane.b32.xlu0 %v1526, 28
  %v2076 = vpop.permute.xlu0 %2075
  %2077 = vrot.lane.b32.xlu0 %v1527, 28
  %v2078 = vpop.permute.xlu0 %2077
  %2079 = vrot.lane.b32.xlu0 %v1528, 28
  %v2080 = vpop.permute.xlu0 %2079
  %2081 = vrot.lane.b32.xlu0 %v1529, 28
  %v2082 = vpop.permute.xlu0 %2081
  %2083 = vrot.lane.b32.xlu0 %v1530, 28
  %v2084 = vpop.permute.xlu0 %2083
  %2085 = vrot.lane.b32.xlu0 %v1845, 28
  %v2086 = vpop.permute.xlu0 %2085
  %2087 = vrot.lane.b32.xlu0 %v2055, 28
  %v2088 = vpop.permute.xlu0 %2087
  %2089 = vrot.lane.b32.xlu0 %v1533, 28
  %v2090 = vpop.permute.xlu0 %2089
  %2091 = vrot.lane.b32.xlu0 %v1534, 28
  %v2092 = vpop.permute.xlu0 %2091
  %2093 = vrot.lane.b32.xlu0 %v1535, 28
  %v2094 = vpop.permute.xlu0 %2093
  %2095 = vrot.lane.b32.xlu0 %v1536, 28
  %v2096 = vpop.permute.xlu0 %2095
  %2097 = vrot.lane.b32.xlu0 %v1537, 28
  %v2098 = vpop.permute.xlu0 %2097
  %2099 = vrot.lane.b32.xlu0 %v1538, 28
  %v2100 = vpop.permute.xlu0 %2099
  %2101 = vrot.lane.b32.xlu0 %v1539, 28
  %v2102 = vpop.permute.xlu0 %2101
  %2103 = vrot.lane.b32.xlu0 %v1540, 28
  %v2104 = vpop.permute.xlu0 %2103
  %2105 = vrot.lane.b32.xlu0 %v1541, 28
  %v2106 = vpop.permute.xlu0 %2105
  %2107 = vrot.lane.b32.xlu0 %v1542, 28
  %v2108 = vpop.permute.xlu0 %2107
  %2109 = vrot.lane.b32.xlu0 %v1543, 28
  %v2110 = vpop.permute.xlu0 %2109
  %2111 = vrot.lane.b32.xlu0 %v1544, 28
  %v2112 = vpop.permute.xlu0 %2111
  %2113 = vrot.lane.b32.xlu0 %v1545, 28
  %v2114 = vpop.permute.xlu0 %2113
  %2115 = vrot.lane.b32.xlu0 %v1546, 28
  %v2116 = vpop.permute.xlu0 %2115
  %2117 = vrot.lane.b32.xlu0 %v1846, 28
  %v2118 = vpop.permute.xlu0 %2117
  %2119 = vrot.lane.b32.xlu0 %v2056, 28
  %v2120 = vpop.permute.xlu0 %2119
  %v2121 = vunpack.c.l.b16 %v1344
  %v2122 = vunpack.c.l.b16 %v1347
  %v2123 = vunpack.c.l.b16 %v1351
  %v2124 = vunpack.c.l.b16 %v1354
  %v2125 = vpack.c.b16 %v2122, %v2121
  %v2126 = vpack.c.b16 %v2124, %v2123
  %2127 = vrot.lane.b32.xlu0 %v1677, 32
  %v2128 = vpop.permute.xlu0 %2127
  %2129 = vrot.lane.b32.xlu0 %v1678, 32
  %v2130 = vpop.permute.xlu0 %2129
  %2131 = vrot.lane.b32.xlu0 %v1679, 32
  %v2132 = vpop.permute.xlu0 %2131
  %2133 = vrot.lane.b32.xlu0 %v1680, 32
  %v2134 = vpop.permute.xlu0 %2133
  %2135 = vrot.lane.b32.xlu0 %v1681, 32
  %v2136 = vpop.permute.xlu0 %2135
  %2137 = vrot.lane.b32.xlu0 %v1682, 32
  %v2138 = vpop.permute.xlu0 %2137
  %2139 = vrot.lane.b32.xlu0 %v1683, 32
  %v2140 = vpop.permute.xlu0 %2139
  %2141 = vrot.lane.b32.xlu0 %v1684, 32
  %v2142 = vpop.permute.xlu0 %2141
  %2143 = vrot.lane.b32.xlu0 %v1685, 32
  %v2144 = vpop.permute.xlu0 %2143
  %2145 = vrot.lane.b32.xlu0 %v1686, 32
  %v2146 = vpop.permute.xlu0 %2145
  %2147 = vrot.lane.b32.xlu0 %v1687, 32
  %v2148 = vpop.permute.xlu0 %2147
  %2149 = vrot.lane.b32.xlu0 %v1688, 32
  %v2150 = vpop.permute.xlu0 %2149
  %2151 = vrot.lane.b32.xlu0 %v1689, 32
  %v2152 = vpop.permute.xlu0 %2151
  %2153 = vrot.lane.b32.xlu0 %v1690, 32
  %v2154 = vpop.permute.xlu0 %2153
  %2155 = vrot.lane.b32.xlu0 %v1915, 32
  %v2156 = vpop.permute.xlu0 %2155
  %2157 = vrot.lane.b32.xlu0 %v2125, 32
  %v2158 = vpop.permute.xlu0 %2157
  %2159 = vrot.lane.b32.xlu0 %v1693, 32
  %v2160 = vpop.permute.xlu0 %2159
  %2161 = vrot.lane.b32.xlu0 %v1694, 32
  %v2162 = vpop.permute.xlu0 %2161
  %2163 = vrot.lane.b32.xlu0 %v1695, 32
  %v2164 = vpop.permute.xlu0 %2163
  %2165 = vrot.lane.b32.xlu0 %v1696, 32
  %v2166 = vpop.permute.xlu0 %2165
  %2167 = vrot.lane.b32.xlu0 %v1697, 32
  %v2168 = vpop.permute.xlu0 %2167
  %2169 = vrot.lane.b32.xlu0 %v1698, 32
  %v2170 = vpop.permute.xlu0 %2169
  %2171 = vrot.lane.b32.xlu0 %v1699, 32
  %v2172 = vpop.permute.xlu0 %2171
  %2173 = vrot.lane.b32.xlu0 %v1700, 32
  %v2174 = vpop.permute.xlu0 %2173
  %2175 = vrot.lane.b32.xlu0 %v1701, 32
  %v2176 = vpop.permute.xlu0 %2175
  %2177 = vrot.lane.b32.xlu0 %v1702, 32
  %v2178 = vpop.permute.xlu0 %2177
  %2179 = vrot.lane.b32.xlu0 %v1703, 32
  %v2180 = vpop.permute.xlu0 %2179
  %2181 = vrot.lane.b32.xlu0 %v1704, 32
  %v2182 = vpop.permute.xlu0 %2181
  %2183 = vrot.lane.b32.xlu0 %v1705, 32
  %v2184 = vpop.permute.xlu0 %2183
  %2185 = vrot.lane.b32.xlu0 %v1706, 32
  %v2186 = vpop.permute.xlu0 %2185
  %2187 = vrot.lane.b32.xlu0 %v1916, 32
  %v2188 = vpop.permute.xlu0 %2187
  %2189 = vrot.lane.b32.xlu0 %v2126, 32
  %v2190 = vpop.permute.xlu0 %2189
  %vm2191 = vcmask 31744
  %v2194 = vsel %vm2191, %v1419, %v1548
  %v2197 = vsel %vm2191, %v1420, %v1550
  %v2200 = vsel %vm2191, %v1421, %v1552
  %v2203 = vsel %vm2191, %v1422, %v1554
  %v2206 = vsel %vm2191, %v1423, %v1556
  %v2209 = vsel %vm2191, %v1424, %v1558
  %v2212 = vsel %vm2191, %v1425, %v1560
  %v2215 = vsel %vm2191, %v1426, %v1562
  %v2218 = vsel %vm2191, %v1427, %v1564
  %v2221 = vsel %vm2191, %v1428, %v1566
  %v2224 = vsel %vm2191, %v1429, %v1568
  %v2227 = vsel %vm2191, %v1430, %v1570
  %v2230 = vsel %vm2191, %v1431, %v1572
  %v2233 = vsel %vm2191, %v1432, %v1574
  %v2236 = vsel %vm2191, %v1433, %v1576
  %v2239 = vsel %vm2191, %v1434, %v1578
  %v2242 = vsel %vm2191, %v1435, %v1580
  %v2245 = vsel %vm2191, %v1436, %v1582
  %v2248 = vsel %vm2191, %v1437, %v1584
  %v2251 = vsel %vm2191, %v1438, %v1586
  %v2254 = vsel %vm2191, %v1439, %v1588
  %v2257 = vsel %vm2191, %v1440, %v1590
  %v2260 = vsel %vm2191, %v1441, %v1592
  %v2263 = vsel %vm2191, %v1442, %v1594
  %v2266 = vsel %vm2191, %v1443, %v1596
  %v2269 = vsel %vm2191, %v1444, %v1598
  %v2272 = vsel %vm2191, %v1445, %v1600
  %v2275 = vsel %vm2191, %v1446, %v1602
  %v2278 = vsel %vm2191, %v1447, %v1604
  %v2281 = vsel %vm2191, %v1448, %v1606
  %v2284 = vsel %vm2191, %v1449, %v1608
  %v2287 = vsel %vm2191, %v1450, %v1610
  %vm2288 = vcmask 64512
  %v2290 = vsel %vm2288, %v2194, %v1708
  %v2292 = vsel %vm2288, %v2197, %v1710
  %v2294 = vsel %vm2288, %v2200, %v1712
  %v2296 = vsel %vm2288, %v2203, %v1714
  %v2298 = vsel %vm2288, %v2206, %v1716
  %v2300 = vsel %vm2288, %v2209, %v1718
  %v2302 = vsel %vm2288, %v2212, %v1720
  %v2304 = vsel %vm2288, %v2215, %v1722
  %v2306 = vsel %vm2288, %v2218, %v1724
  %v2308 = vsel %vm2288, %v2221, %v1726
  %v2310 = vsel %vm2288, %v2224, %v1728
  %v2312 = vsel %vm2288, %v2227, %v1730
  %v2314 = vsel %vm2288, %v2230, %v1732
  %v2316 = vsel %vm2288, %v2233, %v1734
  %v2318 = vsel %vm2288, %v2236, %v1736
  %v2320 = vsel %vm2288, %v2239, %v1738
  %v2322 = vsel %vm2288, %v2242, %v1740
  %v2324 = vsel %vm2288, %v2245, %v1742
  %v2326 = vsel %vm2288, %v2248, %v1744
  %v2328 = vsel %vm2288, %v2251, %v1746
  %v2330 = vsel %vm2288, %v2254, %v1748
  %v2332 = vsel %vm2288, %v2257, %v1750
  %v2334 = vsel %vm2288, %v2260, %v1752
  %v2336 = vsel %vm2288, %v2263, %v1754
  %v2338 = vsel %vm2288, %v2266, %v1756
  %v2340 = vsel %vm2288, %v2269, %v1758
  %v2342 = vsel %vm2288, %v2272, %v1760
  %v2344 = vsel %vm2288, %v2275, %v1762
  %v2346 = vsel %vm2288, %v2278, %v1764
  %v2348 = vsel %vm2288, %v2281, %v1766
  %v2350 = vsel %vm2288, %v2284, %v1768
  %v2352 = vsel %vm2288, %v2287, %v1770
  %vm2353 = vcmask 97280
  %v2355 = vsel %vm2353, %v2290, %v1778
  %v2357 = vsel %vm2353, %v2292, %v1780
  %v2359 = vsel %vm2353, %v2294, %v1782
  %v2361 = vsel %vm2353, %v2296, %v1784
  %v2363 = vsel %vm2353, %v2298, %v1786
  %v2365 = vsel %vm2353, %v2300, %v1788
  %v2367 = vsel %vm2353, %v2302, %v1790
  %v2369 = vsel %vm2353, %v2304, %v1792
  %v2371 = vsel %vm2353, %v2306, %v1794
  %v2373 = vsel %vm2353, %v2308, %v1796
  %v2375 = vsel %vm2353, %v2310, %v1798
  %v2377 = vsel %vm2353, %v2312, %v1800
  %v2379 = vsel %vm2353, %v2314, %v1802
  %v2381 = vsel %vm2353, %v2316, %v1804
  %v2383 = vsel %vm2353, %v2318, %v1806
  %v2385 = vsel %vm2353, %v2320, %v1808
  %v2387 = vsel %vm2353, %v2322, %v1810
  %v2389 = vsel %vm2353, %v2324, %v1812
  %v2391 = vsel %vm2353, %v2326, %v1814
  %v2393 = vsel %vm2353, %v2328, %v1816
  %v2395 = vsel %vm2353, %v2330, %v1818
  %v2397 = vsel %vm2353, %v2332, %v1820
  %v2399 = vsel %vm2353, %v2334, %v1822
  %v2401 = vsel %vm2353, %v2336, %v1824
  %v2403 = vsel %vm2353, %v2338, %v1826
  %v2405 = vsel %vm2353, %v2340, %v1828
  %v2407 = vsel %vm2353, %v2342, %v1830
  %v2409 = vsel %vm2353, %v2344, %v1832
  %v2411 = vsel %vm2353, %v2346, %v1834
  %v2413 = vsel %vm2353, %v2348, %v1836
  %v2415 = vsel %vm2353, %v2350, %v1838
  %v2417 = vsel %vm2353, %v2352, %v1840
  %vm2418 = vcmask 130048
  %v2420 = vsel %vm2418, %v2355, %v1848
  %v2422 = vsel %vm2418, %v2357, %v1850
  %v2424 = vsel %vm2418, %v2359, %v1852
  %v2426 = vsel %vm2418, %v2361, %v1854
  %v2428 = vsel %vm2418, %v2363, %v1856
  %v2430 = vsel %vm2418, %v2365, %v1858
  %v2432 = vsel %vm2418, %v2367, %v1860
  %v2434 = vsel %vm2418, %v2369, %v1862
  %v2436 = vsel %vm2418, %v2371, %v1864
  %v2438 = vsel %vm2418, %v2373, %v1866
  %v2440 = vsel %vm2418, %v2375, %v1868
  %v2442 = vsel %vm2418, %v2377, %v1870
  %v2444 = vsel %vm2418, %v2379, %v1872
  %v2446 = vsel %vm2418, %v2381, %v1874
  %v2448 = vsel %vm2418, %v2383, %v1876
  %v2450 = vsel %vm2418, %v2385, %v1878
  %v2452 = vsel %vm2418, %v2387, %v1880
  %v2454 = vsel %vm2418, %v2389, %v1882
  %v2456 = vsel %vm2418, %v2391, %v1884
  %v2458 = vsel %vm2418, %v2393, %v1886
  %v2460 = vsel %vm2418, %v2395, %v1888
  %v2462 = vsel %vm2418, %v2397, %v1890
  %v2464 = vsel %vm2418, %v2399, %v1892
  %v2466 = vsel %vm2418, %v2401, %v1894
  %v2468 = vsel %vm2418, %v2403, %v1896
  %v2470 = vsel %vm2418, %v2405, %v1898
  %v2472 = vsel %vm2418, %v2407, %v1900
  %v2474 = vsel %vm2418, %v2409, %v1902
  %v2476 = vsel %vm2418, %v2411, %v1904
  %v2478 = vsel %vm2418, %v2413, %v1906
  %v2480 = vsel %vm2418, %v2415, %v1908
  %v2482 = vsel %vm2418, %v2417, %v1910
  %vm2483 = vcmask 162816
  %v2485 = vsel %vm2483, %v2420, %v1918
  %v2487 = vsel %vm2483, %v2422, %v1920
  %v2489 = vsel %vm2483, %v2424, %v1922
  %v2491 = vsel %vm2483, %v2426, %v1924
  %v2493 = vsel %vm2483, %v2428, %v1926
  %v2495 = vsel %vm2483, %v2430, %v1928
  %v2497 = vsel %vm2483, %v2432, %v1930
  %v2499 = vsel %vm2483, %v2434, %v1932
  %v2501 = vsel %vm2483, %v2436, %v1934
  %v2503 = vsel %vm2483, %v2438, %v1936
  %v2505 = vsel %vm2483, %v2440, %v1938
  %v2507 = vsel %vm2483, %v2442, %v1940
  %v2509 = vsel %vm2483, %v2444, %v1942
  %v2511 = vsel %vm2483, %v2446, %v1944
  %v2513 = vsel %vm2483, %v2448, %v1946
  %v2515 = vsel %vm2483, %v2450, %v1948
  %v2517 = vsel %vm2483, %v2452, %v1950
  %v2519 = vsel %vm2483, %v2454, %v1952
  %v2521 = vsel %vm2483, %v2456, %v1954
  %v2523 = vsel %vm2483, %v2458, %v1956
  %v2525 = vsel %vm2483, %v2460, %v1958
  %v2527 = vsel %vm2483, %v2462, %v1960
  %v2529 = vsel %vm2483, %v2464, %v1962
  %v2531 = vsel %vm2483, %v2466, %v1964
  %v2533 = vsel %vm2483, %v2468, %v1966
  %v2535 = vsel %vm2483, %v2470, %v1968
  %v2537 = vsel %vm2483, %v2472, %v1970
  %v2539 = vsel %vm2483, %v2474, %v1972
  %v2541 = vsel %vm2483, %v2476, %v1974
  %v2543 = vsel %vm2483, %v2478, %v1976
  %v2545 = vsel %vm2483, %v2480, %v1978
  %v2547 = vsel %vm2483, %v2482, %v1980
  %vm2548 = vcmask 195584
  %v2550 = vsel %vm2548, %v2485, %v1988
  %v2552 = vsel %vm2548, %v2487, %v1990
  %v2554 = vsel %vm2548, %v2489, %v1992
  %v2556 = vsel %vm2548, %v2491, %v1994
  %v2558 = vsel %vm2548, %v2493, %v1996
  %v2560 = vsel %vm2548, %v2495, %v1998
  %v2562 = vsel %vm2548, %v2497, %v2000
  %v2564 = vsel %vm2548, %v2499, %v2002
  %v2566 = vsel %vm2548, %v2501, %v2004
  %v2568 = vsel %vm2548, %v2503, %v2006
  %v2570 = vsel %vm2548, %v2505, %v2008
  %v2572 = vsel %vm2548, %v2507, %v2010
  %v2574 = vsel %vm2548, %v2509, %v2012
  %v2576 = vsel %vm2548, %v2511, %v2014
  %v2578 = vsel %vm2548, %v2513, %v2016
  %v2580 = vsel %vm2548, %v2515, %v2018
  %v2582 = vsel %vm2548, %v2517, %v2020
  %v2584 = vsel %vm2548, %v2519, %v2022
  %v2586 = vsel %vm2548, %v2521, %v2024
  %v2588 = vsel %vm2548, %v2523, %v2026
  %v2590 = vsel %vm2548, %v2525, %v2028
  %v2592 = vsel %vm2548, %v2527, %v2030
  %v2594 = vsel %vm2548, %v2529, %v2032
  %v2596 = vsel %vm2548, %v2531, %v2034
  %v2598 = vsel %vm2548, %v2533, %v2036
  %v2600 = vsel %vm2548, %v2535, %v2038
  %v2602 = vsel %vm2548, %v2537, %v2040
  %v2604 = vsel %vm2548, %v2539, %v2042
  %v2606 = vsel %vm2548, %v2541, %v2044
  %v2608 = vsel %vm2548, %v2543, %v2046
  %v2610 = vsel %vm2548, %v2545, %v2048
  %v2612 = vsel %vm2548, %v2547, %v2050
  %vm2613 = vcmask 228352
  %v2615 = vsel %vm2613, %v2550, %v2058
  %v2617 = vsel %vm2613, %v2552, %v2060
  %v2619 = vsel %vm2613, %v2554, %v2062
  %v2621 = vsel %vm2613, %v2556, %v2064
  %v2623 = vsel %vm2613, %v2558, %v2066
  %v2625 = vsel %vm2613, %v2560, %v2068
  %v2627 = vsel %vm2613, %v2562, %v2070
  %v2629 = vsel %vm2613, %v2564, %v2072
  %v2631 = vsel %vm2613, %v2566, %v2074
  %v2633 = vsel %vm2613, %v2568, %v2076
  %v2635 = vsel %vm2613, %v2570, %v2078
  %v2637 = vsel %vm2613, %v2572, %v2080
  %v2639 = vsel %vm2613, %v2574, %v2082
  %v2641 = vsel %vm2613, %v2576, %v2084
  %v2643 = vsel %vm2613, %v2578, %v2086
  %v2645 = vsel %vm2613, %v2580, %v2088
  %v2647 = vsel %vm2613, %v2582, %v2090
  %v2649 = vsel %vm2613, %v2584, %v2092
  %v2651 = vsel %vm2613, %v2586, %v2094
  %v2653 = vsel %vm2613, %v2588, %v2096
  %v2655 = vsel %vm2613, %v2590, %v2098
  %v2657 = vsel %vm2613, %v2592, %v2100
  %v2659 = vsel %vm2613, %v2594, %v2102
  %v2661 = vsel %vm2613, %v2596, %v2104
  %v2663 = vsel %vm2613, %v2598, %v2106
  %v2665 = vsel %vm2613, %v2600, %v2108
  %v2667 = vsel %vm2613, %v2602, %v2110
  %v2669 = vsel %vm2613, %v2604, %v2112
  %v2671 = vsel %vm2613, %v2606, %v2114
  %v2673 = vsel %vm2613, %v2608, %v2116
  %v2675 = vsel %vm2613, %v2610, %v2118
  %v2677 = vsel %vm2613, %v2612, %v2120
  %vm2678 = vcmask 261120
  %v2680 = vsel %vm2678, %v2615, %v2128
  %v2682 = vsel %vm2678, %v2617, %v2130
  %v2684 = vsel %vm2678, %v2619, %v2132
  %v2686 = vsel %vm2678, %v2621, %v2134
  %v2688 = vsel %vm2678, %v2623, %v2136
  %v2690 = vsel %vm2678, %v2625, %v2138
  %v2692 = vsel %vm2678, %v2627, %v2140
  %v2694 = vsel %vm2678, %v2629, %v2142
  %v2696 = vsel %vm2678, %v2631, %v2144
  %v2698 = vsel %vm2678, %v2633, %v2146
  %v2700 = vsel %vm2678, %v2635, %v2148
  %v2702 = vsel %vm2678, %v2637, %v2150
  %v2704 = vsel %vm2678, %v2639, %v2152
  %v2706 = vsel %vm2678, %v2641, %v2154
  %v2708 = vsel %vm2678, %v2643, %v2156
  %v2710 = vsel %vm2678, %v2645, %v2158
  %v2712 = vsel %vm2678, %v2647, %v2160
  %v2714 = vsel %vm2678, %v2649, %v2162
  %v2716 = vsel %vm2678, %v2651, %v2164
  %v2718 = vsel %vm2678, %v2653, %v2166
  %v2720 = vsel %vm2678, %v2655, %v2168
  %v2722 = vsel %vm2678, %v2657, %v2170
  %v2724 = vsel %vm2678, %v2659, %v2172
  %v2726 = vsel %vm2678, %v2661, %v2174
  %v2728 = vsel %vm2678, %v2663, %v2176
  %v2730 = vsel %vm2678, %v2665, %v2178
  %v2732 = vsel %vm2678, %v2667, %v2180
  %v2734 = vsel %vm2678, %v2669, %v2182
  %v2736 = vsel %vm2678, %v2671, %v2184
  %v2738 = vsel %vm2678, %v2673, %v2186
  %v2740 = vsel %vm2678, %v2675, %v2188
  %v2742 = vsel %vm2678, %v2677, %v2190
  %v2743 = vld [vmem:[%s1] sm:$0xf]
  %vm2744 = vcmask 293888
  %v2746 = vsel %vm2744, %v2743, 0
  %v2748 = vsel %vm2744, %v2680, 0
  %v2750 = vsel %vm2744, %v2682, 0
  %v2752 = vsel %vm2744, %v2684, 0
  %v2754 = vsel %vm2744, %v2686, 0
  %v2756 = vsel %vm2744, %v2688, 0
  %v2758 = vsel %vm2744, %v2690, 0
  %v2760 = vsel %vm2744, %v2692, 0
  %v2762 = vsel %vm2744, %v2694, 0
  %v2764 = vsel %vm2744, %v2696, 0
  %v2766 = vsel %vm2744, %v2698, 0
  %v2768 = vsel %vm2744, %v2700, 0
  %v2770 = vsel %vm2744, %v2702, 0
  %v2772 = vsel %vm2744, %v2704, 0
  %v2774 = vsel %vm2744, %v2706, 0
  %v2776 = vsel %vm2744, %v2708, 0
  %v2778 = vsel %vm2744, %v2710, 0
  %v2780 = vsel %vm2744, %v2712, 0
  %v2782 = vsel %vm2744, %v2714, 0
  %v2784 = vsel %vm2744, %v2716, 0
  %v2786 = vsel %vm2744, %v2718, 0
  %v2788 = vsel %vm2744, %v2720, 0
  %v2790 = vsel %vm2744, %v2722, 0
  %v2792 = vsel %vm2744, %v2724, 0
  %v2794 = vsel %vm2744, %v2726, 0
  %v2796 = vsel %vm2744, %v2728, 0
  %v2798 = vsel %vm2744, %v2730, 0
  %v2800 = vsel %vm2744, %v2732, 0
  %v2802 = vsel %vm2744, %v2734, 0
  %v2804 = vsel %vm2744, %v2736, 0
  %v2806 = vsel %vm2744, %v2738, 0
  %v2808 = vsel %vm2744, %v2740, 0
  %v2810 = vsel %vm2744, %v2742, 0
  %2812 = vmatpush.bf16.xpose.msra.mxu0 %v2762
  %2813 = vmatpush.bf16.xpose.msra.mxu0 %v2760
  %2814 = vmatpush.bf16.xpose.msra.mxu0 %v2758
  %2815 = vmatpush.bf16.xpose.msra.mxu0 %v2756
  %2816 = vmatpush.bf16.xpose.msra.mxu0 %v2754
  %2817 = vmatpush.bf16.xpose.msra.mxu0 %v2752
  %2818 = vmatpush.bf16.xpose.msra.mxu0 %v2750
  %2819 = vmatpush.bf16.xpose.msra.mxu0 %v2748
  %2820 = vmatmul.bf16.gmra.mxu0 %v2746
  %v2821 = vpop.f32.mrf.mxu0
  %v2822 = vadd.f32 0.0, %v2821
  %v2823 = vpop.f32.mrf.mxu0
  %2824 = vdwg.mxu0
  %2825 = vmatpush.bf16.xpose.msra.mxu0 %v2778
  %2826 = vmatpush.bf16.xpose.msra.mxu0 %v2776
  %2827 = vmatpush.bf16.xpose.msra.mxu0 %v2774
  %2828 = vmatpush.bf16.xpose.msra.mxu0 %v2772
  %2829 = vmatpush.bf16.xpose.msra.mxu0 %v2770
  %2830 = vmatpush.bf16.xpose.msra.mxu0 %v2768
  %2831 = vmatpush.bf16.xpose.msra.mxu0 %v2766
  %2832 = vmatpush.bf16.xpose.msra.mxu0 %v2764
  %2833 = vmatmul.bf16.gmra.mxu0 %v2746
  %v2834 = vpop.f32.mrf.mxu0
  %v2835 = vadd.f32 0.0, %v2834
  %v2836 = vpop.f32.mrf.mxu0
  %2837 = vdwg.mxu0
  %2838 = vmatpush.bf16.xpose.msra.mxu0 %v2794
  %2839 = vmatpush.bf16.xpose.msra.mxu0 %v2792
  %2840 = vmatpush.bf16.xpose.msra.mxu0 %v2790
  %2841 = vmatpush.bf16.xpose.msra.mxu0 %v2788
  %2842 = vmatpush.bf16.xpose.msra.mxu0 %v2786
  %2843 = vmatpush.bf16.xpose.msra.mxu0 %v2784
  %2844 = vmatpush.bf16.xpose.msra.mxu0 %v2782
  %2845 = vmatpush.bf16.xpose.msra.mxu0 %v2780
  %2846 = vmatmul.bf16.gmra.mxu0 %v2746
  %v2847 = vpop.f32.mrf.mxu0
  %v2848 = vadd.f32 0.0, %v2847
  %v2849 = vpop.f32.mrf.mxu0
  %2850 = vdwg.mxu0
  %2851 = vmatpush.bf16.xpose.msra.mxu0 %v2810
  %2852 = vmatpush.bf16.xpose.msra.mxu0 %v2808
  %2853 = vmatpush.bf16.xpose.msra.mxu0 %v2806
  %2854 = vmatpush.bf16.xpose.msra.mxu0 %v2804
  %2855 = vmatpush.bf16.xpose.msra.mxu0 %v2802
  %2856 = vmatpush.bf16.xpose.msra.mxu0 %v2800
  %2857 = vmatpush.bf16.xpose.msra.mxu0 %v2798
  %2858 = vmatpush.bf16.xpose.msra.mxu0 %v2796
  %2859 = vmatmul.bf16.gmra.mxu0 %v2746
  %v2860 = vpop.f32.mrf.mxu0
  %v2861 = vadd.f32 0.0, %v2860
  %v2862 = vpop.f32.mrf.mxu0
  %2863 = vdwg.mxu0
  %v2864 = vadd.f32 %v2822, %v2835
  %v2865 = vadd.f32 %v2864, %v2848
  %v2866 = vadd.f32 %v2865, %v2861
  %2867 = vadd.xlane.f32.xlu0 %v2866
  %v2868 = vpop.xlane.xlu0 %2867
  %v2869 = vmul.f32 %v2868, 0.001953125
  %v2870 = vsub.f32 %v2822, %v2869
  %v2871 = vsub.f32 %v2835, %v2869
  %v2872 = vsub.f32 %v2848, %v2869
  %v2873 = vsub.f32 %v2861, %v2869
  %v2874 = vmul.f32 %v2870, %v2870
  %v2875 = vmul.f32 %v2871, %v2871
  %v2876 = vmul.f32 %v2872, %v2872
  %v2877 = vmul.f32 %v2873, %v2873
  %v2878 = vadd.f32 %v2874, %v2875
  %v2879 = vadd.f32 %v2878, %v2876
  %v2880 = vadd.f32 %v2879, %v2877
  %2881 = vadd.xlane.f32.xlu0 %v2880
  %v2882 = vpop.xlane.xlu0 %2881
  %v2883 = vmul.f32 %v2882, 0.001953125
  %v2884 = vadd.f32 %v2883, 1e-05
  %v2885 = vrsqrt.pop %v2884
  %v2886 = vmul.f32 %v2885, %v2884
  %v2887 = vmul.f32 %v2886, %v2885
  %v2888 = vmul.f32 0.5, %v2887
  %v2889 = vsub.f32 1.5, %v2888
  %v2890 = vmul.f32 %v2885, %v2889
  %vm2891 = vweird.f32 %v2884
  %vm2892 = vweird.f32 %v2885
  %vm2893 = vmor %vm2891, %vm2892
  %v2894 = vsel %vm2893, %v2885, %v2890
  %v2895 = vld [vmem:[%s2] sm:$0xff]
  %v2896 = vmul.f32 %v2895, %v2894
  %v2897 = vld [vmem:[%s3] sm:$0xff]
  %v2898 = vmul.f32 %v2869, %v2896
  %v2899 = vsub.f32 %v2897, %v2898
  %2901 = vset.pattern.permute.xlu0 0
  %2902 = vperm.xlu0 %2901, %v2896
  %v2903 = vpop.permute.xlu0 %2902
  %v2905 = vmul.f32 %v2822, %v2903
  %v2906 = vmul.f32 %v2835, %v2903
  %v2907 = vmul.f32 %v2848, %v2903
  %v2908 = vmul.f32 %v2861, %v2903
  %2910 = vset.pattern.permute.xlu0 0
  %2911 = vperm.xlu0 %2910, %v2899
  %v2912 = vpop.permute.xlu0 %2911
  %v2914 = vadd.f32 %v2905, %v2912
  %v2915 = vadd.f32 %v2906, %v2912
  %v2916 = vadd.f32 %v2907, %v2912
  %v2917 = vadd.f32 %v2908, %v2912
  %v2918 = vmax.f32 %v2914, 0.0
  %v2919 = vmax.f32 %v2915, 0.0
  %v2920 = vmax.f32 %v2916, 0.0
  %v2921 = vmax.f32 %v2917, 0.0
  %2922 = vst [vmem:[%s4] sm:$0xff] %v2918
  %2923 = vst [vmem:[%s4 + $0x8] sm:$0xff] %v2919
  %s2924 = scalar_lea.vmem %s4, 16
  %2925 = vst [vmem:[%s2924] sm:$0xff] %v2920
  %2926 = vst [vmem:[%s2924 + $0x8] sm:$0xff] %v2921
  // Predicated region
  $region18: #{conv_bn_relu_forward.1} parent=0 // pred_check
    _
  $region19: #{conv_bn_relu_forward.1} parent=0 // pred_check_branch
    %2928 = sbr.rel (0) target = $region21
  $region20: #{conv_bn_relu_forward.1} parent=0 // pred_region
    _
  $region21: #{conv_bn_relu_forward.1} parent=0 // pred_fallthru
    _
  // Predicated region
  $region22: #{conv_bn_relu_forward.1} parent=0 // pred_check
    _
  $region23: #{conv_bn_relu_forward.1} parent=0 // pred_check_branch
    %2930 = sbr.rel (0) target = $region25
  $region24: #{conv_bn_relu_forward.1} parent=0 // pred_region
    _
  $region25: #{conv_bn_relu_forward.1} parent=0 // pred_fallthru
    _

</llo_original>
